<compile_context>
chip_gen: v7x
topology: tpu7x:2x2x1
jax: 0.10.0
libtpu: 0.0.40
codegen_flags: <defaults>
</compile_context>

<pallas_src>
import functools

import jax
import jax.numpy as jnp
from jax import lax
from jax.experimental import pallas as pl
from jax.experimental.pallas import tpu as pltpu


def _conv3d_in_relu_kernel(x_ref, w_ref, *rest, K, stride, Do, Ho, Wo, Cout,
                           eps, use_in, use_relu, has_bias):
    """One sample: fused Conv3d (VALID) + InstanceNorm3d + ReLU.

    x_ref: (K, D, Ho, W*Cin)      H-pre-shifted, channels-last, (W,Cin) merged.
    w_ref: (K*K, W*Cin, Wo*Cout)  kw-Toeplitz-expanded weights.
    b_ref: (1, Wo*Cout)           optional conv bias (bn=False only).
    o_ref: (Do*Ho, Wo*Cout)
    """
    if has_bias:
        b_ref, o_ref = rest
    else:
        (o_ref,) = rest

    WC = x_ref.shape[-1]            # W * Cin   (contraction dim)
    NC = o_ref.shape[-1]            # Wo * Cout (lane dim, multiple of 128 here)
    L2 = Do * Ho
    L = Do * Ho * Wo
    f32 = jnp.float32

    # ---- conv: 9 (kd, kh) matmuls accumulated in f32 on the MXU ----
    acc = jnp.zeros((L2, NC), f32)
    j = 0
    for kd in range(K):
        for kh in range(K):
            if stride == 1:
                slab = x_ref[kh, kd:kd + Do, :, :]            # (Do, Ho, WC)
            else:
                slab = x_ref[kh, pl.ds(kd, Do, stride), :, :]
            acc = acc + jnp.dot(slab.reshape(L2, WC), w_ref[j],
                                preferred_element_type=f32)
            j += 1

    # ---- optional conv bias (present only when bn=False in the module) ----
    if has_bias:
        acc = acc + b_ref[...]                                # (1, NC) broadcast

    # ---- InstanceNorm3d: per-channel stats over all spatial positions ----
    if use_in:
        s1 = jnp.sum(acc, axis=0, keepdims=True)              # (1, NC)
        s2 = jnp.sum(acc * acc, axis=0, keepdims=True)        # (1, NC)
        # lanes are interleaved as wo*Cout + c -> fold the Wo groups together.
        ch1 = jnp.zeros((1, Cout), f32)
        ch2 = jnp.zeros((1, Cout), f32)
        for wo in range(Wo):
            ch1 = ch1 + s1[:, wo * Cout:(wo + 1) * Cout]
            ch2 = ch2 + s2[:, wo * Cout:(wo + 1) * Cout]
        inv_L = 1.0 / float(L)
        mu = ch1 * inv_L
        var = ch2 * inv_L - mu * mu                           # biased variance
        inv = lax.rsqrt(var + eps)
        mu_b = jnp.tile(mu, (1, Wo))                          # back to (1, NC)
        inv_b = jnp.tile(inv, (1, Wo))
        acc = (acc - mu_b) * inv_b

    # ---- ReLU ----
    if use_relu:
        acc = jnp.maximum(acc, 0.0)

    o_ref[...] = acc.astype(o_ref.dtype)


def conv3d_block(x, weight, bias=None, *, stride=1, bn=True, relu=True,
                 eps=1e-5):
    """x: (N, Cin, D, H, W) f32; weight: (Cout, Cin, K, K, K) (PyTorch layout);
    bias: (Cout,) or None (the module uses bias only when bn=False).
    Returns (N, Cout, Do, Ho, Wo)."""
    N, Cin, D, H, W = x.shape
    Cout, Cin_w, K, K2, K3 = weight.shape
    assert Cin_w == Cin and K == K2 == K3
    assert stride in (1, 2)
    s = stride
    Do = (D - K) // s + 1
    Ho = (H - K) // s + 1
    Wo = (W - K) // s + 1
    WC = W * Cin
    NC = Wo * Cout
    L2 = Do * Ho
    f32 = jnp.float32

    x = x.astype(f32)
    weight = weight.astype(f32)

    # NCDHW -> NDHWC (single transpose, fused by XLA inside the jit).
    x_t = jnp.transpose(x, (0, 2, 3, 4, 1))                       # (N,D,H,W,Cin)
    # Pre-shift along H for every kh so the kernel only slices major dims
    # (no unaligned sublane slices inside the kernel).
    x_sh = jnp.stack(
        [x_t[:, :, kh:kh + s * (Ho - 1) + 1:s, :, :] for kh in range(K)],
        axis=1)                                                   # (N,K,D,Ho,W,Cin)
    x_sh = x_sh.reshape(N, K, D, Ho, WC)

    # kw-Toeplitz weight expansion (exact 0/1 placement, built once per jit):
    # w_big[kd*K+kh, w*Cin+ci, wo*Cout+co] = weight[co,ci,kd,kh,w-s*wo] or 0.
    w_perm = jnp.transpose(weight, (2, 3, 4, 1, 0))               # (kd,kh,kw,Cin,Cout)
    w_idx = jnp.arange(W)[:, None, None]
    wo_idx = jnp.arange(Wo)[None, :, None]
    kw_idx = jnp.arange(K)[None, None, :]
    onehot = (w_idx == s * wo_idx + kw_idx).astype(f32)           # (W, Wo, K)
    w_big = jnp.einsum('wok,dhkic->dhwioc', onehot, w_perm,
                       precision=lax.Precision.HIGHEST)           # (K,K,W,Cin,Wo,Cout)
    w_big = w_big.reshape(K * K, WC, NC)

    has_bias = bias is not None
    args = [x_sh, w_big]
    in_specs = [
        pl.BlockSpec((None, K, D, Ho, WC), lambda n: (n, 0, 0, 0, 0)),
        pl.BlockSpec((K * K, WC, NC), lambda n: (0, 0, 0)),
    ]
    if has_bias:
        # lane index in the kernel is wo*Cout + c -> tile the bias Wo times.
        b_t = jnp.tile(bias.astype(f32).reshape(1, Cout), (1, Wo))  # (1, NC)
        args.append(b_t)
        in_specs.append(pl.BlockSpec((1, NC), lambda n: (0, 0)))

    kernel = functools.partial(
        _conv3d_in_relu_kernel, K=K, stride=s, Do=Do, Ho=Ho, Wo=Wo, Cout=Cout,
        eps=eps, use_in=bn, use_relu=relu, has_bias=has_bias)

    flops = 2 * N * (K * K) * L2 * WC * NC
    bytes_accessed = 4 * (x_sh.size + w_big.size + N * L2 * NC
                          + (NC if has_bias else 0))
    transcendentals = N * Cout if bn else 0

    out = pl.pallas_call(
        kernel,
        grid=(N,),
        in_specs=in_specs,
        out_specs=pl.BlockSpec((None, L2, NC), lambda n: (n, 0, 0)),
        out_shape=jax.ShapeDtypeStruct((N, L2, NC), f32),
        compiler_params=pltpu.CompilerParams(
            dimension_semantics=("parallel",)),
        cost_estimate=pl.CostEstimate(
            flops=flops, transcendentals=transcendentals,
            bytes_accessed=bytes_accessed),
    )(*args)

    # (N, Do*Ho, Wo*Cout) -> (N, Cout, Do, Ho, Wo)
    out = out.reshape(N, Do, Ho, Wo, Cout)
    return jnp.transpose(out, (0, 4, 1, 2, 3))


def conv3d_block_reference(x, weight, bias=None, *, stride=1, bn=True,
                           relu=True, eps=1e-5):
    """Pure-JAX reference mirroring the PyTorch module forward (true f32)."""
    dn = lax.conv_dimension_numbers(x.shape, weight.shape,
                                    ("NCDHW", "OIDHW", "NCDHW"))
    y = lax.conv_general_dilated(x, weight, (stride,) * 3, "VALID",
                                 dimension_numbers=dn,
                                 precision=lax.Precision.HIGHEST)
    if bias is not None:
        y = y + bias.reshape(1, -1, 1, 1, 1)
    if bn:
        mu = jnp.mean(y, axis=(2, 3, 4), keepdims=True)
        var = jnp.mean((y - mu) ** 2, axis=(2, 3, 4), keepdims=True)
        y = (y - mu) * lax.rsqrt(var + eps)
    if relu:
        y = jnp.maximum(y, 0.0)
    return y


if __name__ == "__main__":
    # Small shapes consistent with the module: batch=2, Cin=16, Cout=32,
    # 10^3 spatial, kernel_size=3, stride=1.
    N, Cin, Cout, D, H, W, K = 2, 16, 32, 10, 10, 10, 3

    key = jax.random.PRNGKey(0)
    kx, kw, kb = jax.random.split(key, 3)
    x = jax.random.normal(kx, (N, Cin, D, H, W), jnp.float32)
    weight = 0.1 * jax.random.normal(kw, (Cout, Cin, K, K, K), jnp.float32)
    bias = 0.1 * jax.random.normal(kb, (Cout,), jnp.float32)

    # Config A: module defaults (bn=True -> InstanceNorm, conv bias disabled).
    fwd_a = jax.jit(functools.partial(conv3d_block, stride=1, bn=True, relu=True))
    out_a = jax.block_until_ready(fwd_a(x, weight))
    ref_a = conv3d_block_reference(x, weight, stride=1, bn=True, relu=True)
    assert out_a.shape == (N, Cout, D - K + 1, H - K + 1, W - K + 1)
    assert jnp.allclose(out_a, ref_a, atol=1e-4, rtol=1e-4), "bn=True mismatch"

    # Config B: bn=False -> conv bias enabled, no InstanceNorm.
    fwd_b = jax.jit(functools.partial(conv3d_block, stride=1, bn=False, relu=True))
    out_b = jax.block_until_ready(fwd_b(x, weight, bias))
    ref_b = conv3d_block_reference(x, weight, bias, stride=1, bn=False, relu=True)
    assert jnp.allclose(out_b, ref_b, atol=1e-4, rtol=1e-4), "bn=False mismatch"

    print("KERNEL_OK")
</pallas_src>

<mosaic_0001>
module attributes {stable_mosaic.version = 11 : i64} {
  func.func @_conv3d_in_relu_kernel(%arg0: i32, %arg1: memref<1x3x10x8x160xf32, #tpu.memory_space<vmem>>, %arg2: memref<9x160x256xf32, #tpu.memory_space<vmem>>, %arg3: memref<1x64x256xf32, #tpu.memory_space<vmem>>) attributes {dimension_semantics = [#tpu.dimension_semantics<parallel>], iteration_bounds = array<i64: 2>, scalar_prefetch = 0 : i64, scratch_operands = 0 : i64, tpu.core_type = #tpu.core_type<tc>, window_params = [{transform_indices = @transform_0, window_bounds = array<i64: 1, 3, 10, 8, 160>}, {pipeline_mode = #tpu.pipeline_mode<synchronous>, transform_indices = @transform_1, window_bounds = array<i64: 9, 160, 256>}, {transform_indices = @transform_2, window_bounds = array<i64: 1, 64, 256>}]} {
    %cst = arith.constant 0.000000e+00 : f32
    %0 = vector.broadcast %cst : f32 to vector<64x256xf32>
    %c0 = arith.constant 0 : index
    %c0_0 = arith.constant 0 : index
    %c0_1 = arith.constant 0 : index
    %c0_2 = arith.constant 0 : index
    %c0_3 = arith.constant 0 : index
    %1 = vector.load %arg1[%c0, %c0_0, %c0_1, %c0_2, %c0_3] : memref<1x3x10x8x160xf32, #tpu.memory_space<vmem>>, vector<1x1x8x8x160xf32>
    %2 = vector.shape_cast %1 : vector<1x1x8x8x160xf32> to vector<8x8x160xf32>
    %3 = vector.shape_cast %2 : vector<8x8x160xf32> to vector<64x160xf32>
    %c0_4 = arith.constant 0 : index
    %c0_5 = arith.constant 0 : index
    %c0_6 = arith.constant 0 : index
    %4 = vector.load %arg2[%c0_4, %c0_5, %c0_6] : memref<9x160x256xf32, #tpu.memory_space<vmem>>, vector<1x160x256xf32>
    %5 = vector.shape_cast %4 : vector<1x160x256xf32> to vector<160x256xf32>
    %cst_7 = arith.constant dense<0.000000e+00> : vector<64x256xf32>
    %6 = tpu.matmul %3, %5, %cst_7 {dimension_numbers = #tpu.dot_dimension_numbers<[1], [0], [0], [1], [0, 0, 1, 1], [], []>} : vector<64x160xf32>, vector<160x256xf32>, vector<64x256xf32> -> vector<64x256xf32>
    %7 = arith.addf %0, %6 : vector<64x256xf32>
    %c0_8 = arith.constant 0 : index
    %c1 = arith.constant 1 : index
    %c0_9 = arith.constant 0 : index
    %c0_10 = arith.constant 0 : index
    %c0_11 = arith.constant 0 : index
    %8 = vector.load %arg1[%c0_8, %c1, %c0_9, %c0_10, %c0_11] : memref<1x3x10x8x160xf32, #tpu.memory_space<vmem>>, vector<1x1x8x8x160xf32>
    %9 = vector.shape_cast %8 : vector<1x1x8x8x160xf32> to vector<8x8x160xf32>
    %10 = vector.shape_cast %9 : vector<8x8x160xf32> to vector<64x160xf32>
    %c1_12 = arith.constant 1 : index
    %c0_13 = arith.constant 0 : index
    %c0_14 = arith.constant 0 : index
    %11 = vector.load %arg2[%c1_12, %c0_13, %c0_14] : memref<9x160x256xf32, #tpu.memory_space<vmem>>, vector<1x160x256xf32>
    %12 = vector.shape_cast %11 : vector<1x160x256xf32> to vector<160x256xf32>
    %cst_15 = arith.constant dense<0.000000e+00> : vector<64x256xf32>
    %13 = tpu.matmul %10, %12, %cst_15 {dimension_numbers = #tpu.dot_dimension_numbers<[1], [0], [0], [1], [0, 0, 1, 1], [], []>} : vector<64x160xf32>, vector<160x256xf32>, vector<64x256xf32> -> vector<64x256xf32>
    %14 = arith.addf %7, %13 : vector<64x256xf32>
    %c0_16 = arith.constant 0 : index
    %c2 = arith.constant 2 : index
    %c0_17 = arith.constant 0 : index
    %c0_18 = arith.constant 0 : index
    %c0_19 = arith.constant 0 : index
    %15 = vector.load %arg1[%c0_16, %c2, %c0_17, %c0_18, %c0_19] : memref<1x3x10x8x160xf32, #tpu.memory_space<vmem>>, vector<1x1x8x8x160xf32>
    %16 = vector.shape_cast %15 : vector<1x1x8x8x160xf32> to vector<8x8x160xf32>
    %17 = vector.shape_cast %16 : vector<8x8x160xf32> to vector<64x160xf32>
    %c2_20 = arith.constant 2 : index
    %c0_21 = arith.constant 0 : index
    %c0_22 = arith.constant 0 : index
    %18 = vector.load %arg2[%c2_20, %c0_21, %c0_22] : memref<9x160x256xf32, #tpu.memory_space<vmem>>, vector<1x160x256xf32>
    %19 = vector.shape_cast %18 : vector<1x160x256xf32> to vector<160x256xf32>
    %cst_23 = arith.constant dense<0.000000e+00> : vector<64x256xf32>
    %20 = tpu.matmul %17, %19, %cst_23 {dimension_numbers = #tpu.dot_dimension_numbers<[1], [0], [0], [1], [0, 0, 1, 1], [], []>} : vector<64x160xf32>, vector<160x256xf32>, vector<64x256xf32> -> vector<64x256xf32>
    %21 = arith.addf %14, %20 : vector<64x256xf32>
    %c0_24 = arith.constant 0 : index
    %c0_25 = arith.constant 0 : index
    %c1_26 = arith.constant 1 : index
    %c0_27 = arith.constant 0 : index
    %c0_28 = arith.constant 0 : index
    %22 = vector.load %arg1[%c0_24, %c0_25, %c1_26, %c0_27, %c0_28] : memref<1x3x10x8x160xf32, #tpu.memory_space<vmem>>, vector<1x1x8x8x160xf32>
    %23 = vector.shape_cast %22 : vector<1x1x8x8x160xf32> to vector<8x8x160xf32>
    %24 = vector.shape_cast %23 : vector<8x8x160xf32> to vector<64x160xf32>
    %c3 = arith.constant 3 : index
    %c0_29 = arith.constant 0 : index
    %c0_30 = arith.constant 0 : index
    %25 = vector.load %arg2[%c3, %c0_29, %c0_30] : memref<9x160x256xf32, #tpu.memory_space<vmem>>, vector<1x160x256xf32>
    %26 = vector.shape_cast %25 : vector<1x160x256xf32> to vector<160x256xf32>
    %cst_31 = arith.constant dense<0.000000e+00> : vector<64x256xf32>
    %27 = tpu.matmul %24, %26, %cst_31 {dimension_numbers = #tpu.dot_dimension_numbers<[1], [0], [0], [1], [0, 0, 1, 1], [], []>} : vector<64x160xf32>, vector<160x256xf32>, vector<64x256xf32> -> vector<64x256xf32>
    %28 = arith.addf %21, %27 : vector<64x256xf32>
    %c0_32 = arith.constant 0 : index
    %c1_33 = arith.constant 1 : index
    %c1_34 = arith.constant 1 : index
    %c0_35 = arith.constant 0 : index
    %c0_36 = arith.constant 0 : index
    %29 = vector.load %arg1[%c0_32, %c1_33, %c1_34, %c0_35, %c0_36] : memref<1x3x10x8x160xf32, #tpu.memory_space<vmem>>, vector<1x1x8x8x160xf32>
    %30 = vector.shape_cast %29 : vector<1x1x8x8x160xf32> to vector<8x8x160xf32>
    %31 = vector.shape_cast %30 : vector<8x8x160xf32> to vector<64x160xf32>
    %c4 = arith.constant 4 : index
    %c0_37 = arith.constant 0 : index
    %c0_38 = arith.constant 0 : index
    %32 = vector.load %arg2[%c4, %c0_37, %c0_38] : memref<9x160x256xf32, #tpu.memory_space<vmem>>, vector<1x160x256xf32>
    %33 = vector.shape_cast %32 : vector<1x160x256xf32> to vector<160x256xf32>
    %cst_39 = arith.constant dense<0.000000e+00> : vector<64x256xf32>
    %34 = tpu.matmul %31, %33, %cst_39 {dimension_numbers = #tpu.dot_dimension_numbers<[1], [0], [0], [1], [0, 0, 1, 1], [], []>} : vector<64x160xf32>, vector<160x256xf32>, vector<64x256xf32> -> vector<64x256xf32>
    %35 = arith.addf %28, %34 : vector<64x256xf32>
    %c0_40 = arith.constant 0 : index
    %c2_41 = arith.constant 2 : index
    %c1_42 = arith.constant 1 : index
    %c0_43 = arith.constant 0 : index
    %c0_44 = arith.constant 0 : index
    %36 = vector.load %arg1[%c0_40, %c2_41, %c1_42, %c0_43, %c0_44] : memref<1x3x10x8x160xf32, #tpu.memory_space<vmem>>, vector<1x1x8x8x160xf32>
    %37 = vector.shape_cast %36 : vector<1x1x8x8x160xf32> to vector<8x8x160xf32>
    %38 = vector.shape_cast %37 : vector<8x8x160xf32> to vector<64x160xf32>
    %c5 = arith.constant 5 : index
    %c0_45 = arith.constant 0 : index
    %c0_46 = arith.constant 0 : index
    %39 = vector.load %arg2[%c5, %c0_45, %c0_46] : memref<9x160x256xf32, #tpu.memory_space<vmem>>, vector<1x160x256xf32>
    %40 = vector.shape_cast %39 : vector<1x160x256xf32> to vector<160x256xf32>
    %cst_47 = arith.constant dense<0.000000e+00> : vector<64x256xf32>
    %41 = tpu.matmul %38, %40, %cst_47 {dimension_numbers = #tpu.dot_dimension_numbers<[1], [0], [0], [1], [0, 0, 1, 1], [], []>} : vector<64x160xf32>, vector<160x256xf32>, vector<64x256xf32> -> vector<64x256xf32>
    %42 = arith.addf %35, %41 : vector<64x256xf32>
    %c0_48 = arith.constant 0 : index
    %c0_49 = arith.constant 0 : index
    %c2_50 = arith.constant 2 : index
    %c0_51 = arith.constant 0 : index
    %c0_52 = arith.constant 0 : index
    %43 = vector.load %arg1[%c0_48, %c0_49, %c2_50, %c0_51, %c0_52] : memref<1x3x10x8x160xf32, #tpu.memory_space<vmem>>, vector<1x1x8x8x160xf32>
    %44 = vector.shape_cast %43 : vector<1x1x8x8x160xf32> to vector<8x8x160xf32>
    %45 = vector.shape_cast %44 : vector<8x8x160xf32> to vector<64x160xf32>
    %c6 = arith.constant 6 : index
    %c0_53 = arith.constant 0 : index
    %c0_54 = arith.constant 0 : index
    %46 = vector.load %arg2[%c6, %c0_53, %c0_54] : memref<9x160x256xf32, #tpu.memory_space<vmem>>, vector<1x160x256xf32>
    %47 = vector.shape_cast %46 : vector<1x160x256xf32> to vector<160x256xf32>
    %cst_55 = arith.constant dense<0.000000e+00> : vector<64x256xf32>
    %48 = tpu.matmul %45, %47, %cst_55 {dimension_numbers = #tpu.dot_dimension_numbers<[1], [0], [0], [1], [0, 0, 1, 1], [], []>} : vector<64x160xf32>, vector<160x256xf32>, vector<64x256xf32> -> vector<64x256xf32>
    %49 = arith.addf %42, %48 : vector<64x256xf32>
    %c0_56 = arith.constant 0 : index
    %c1_57 = arith.constant 1 : index
    %c2_58 = arith.constant 2 : index
    %c0_59 = arith.constant 0 : index
    %c0_60 = arith.constant 0 : index
    %50 = vector.load %arg1[%c0_56, %c1_57, %c2_58, %c0_59, %c0_60] : memref<1x3x10x8x160xf32, #tpu.memory_space<vmem>>, vector<1x1x8x8x160xf32>
    %51 = vector.shape_cast %50 : vector<1x1x8x8x160xf32> to vector<8x8x160xf32>
    %52 = vector.shape_cast %51 : vector<8x8x160xf32> to vector<64x160xf32>
    %c7 = arith.constant 7 : index
    %c0_61 = arith.constant 0 : index
    %c0_62 = arith.constant 0 : index
    %53 = vector.load %arg2[%c7, %c0_61, %c0_62] : memref<9x160x256xf32, #tpu.memory_space<vmem>>, vector<1x160x256xf32>
    %54 = vector.shape_cast %53 : vector<1x160x256xf32> to vector<160x256xf32>
    %cst_63 = arith.constant dense<0.000000e+00> : vector<64x256xf32>
    %55 = tpu.matmul %52, %54, %cst_63 {dimension_numbers = #tpu.dot_dimension_numbers<[1], [0], [0], [1], [0, 0, 1, 1], [], []>} : vector<64x160xf32>, vector<160x256xf32>, vector<64x256xf32> -> vector<64x256xf32>
    %56 = arith.addf %49, %55 : vector<64x256xf32>
    %c0_64 = arith.constant 0 : index
    %c2_65 = arith.constant 2 : index
    %c2_66 = arith.constant 2 : index
    %c0_67 = arith.constant 0 : index
    %c0_68 = arith.constant 0 : index
    %57 = vector.load %arg1[%c0_64, %c2_65, %c2_66, %c0_67, %c0_68] : memref<1x3x10x8x160xf32, #tpu.memory_space<vmem>>, vector<1x1x8x8x160xf32>
    %58 = vector.shape_cast %57 : vector<1x1x8x8x160xf32> to vector<8x8x160xf32>
    %59 = vector.shape_cast %58 : vector<8x8x160xf32> to vector<64x160xf32>
    %c8 = arith.constant 8 : index
    %c0_69 = arith.constant 0 : index
    %c0_70 = arith.constant 0 : index
    %60 = vector.load %arg2[%c8, %c0_69, %c0_70] : memref<9x160x256xf32, #tpu.memory_space<vmem>>, vector<1x160x256xf32>
    %61 = vector.shape_cast %60 : vector<1x160x256xf32> to vector<160x256xf32>
    %cst_71 = arith.constant dense<0.000000e+00> : vector<64x256xf32>
    %62 = tpu.matmul %59, %61, %cst_71 {dimension_numbers = #tpu.dot_dimension_numbers<[1], [0], [0], [1], [0, 0, 1, 1], [], []>} : vector<64x160xf32>, vector<160x256xf32>, vector<64x256xf32> -> vector<64x256xf32>
    %63 = arith.addf %56, %62 : vector<64x256xf32>
    %cst_72 = arith.constant dense<0.000000e+00> : vector<256xf32>
    %64 = vector.multi_reduction <add>, %63, %cst_72 [0] : vector<64x256xf32> to vector<256xf32>
    %65 = vector.shape_cast %64 : vector<256xf32> to vector<1x256xf32>
    %66 = arith.mulf %63, %63 : vector<64x256xf32>
    %cst_73 = arith.constant dense<0.000000e+00> : vector<256xf32>
    %67 = vector.multi_reduction <add>, %66, %cst_73 [0] : vector<64x256xf32> to vector<256xf32>
    %68 = vector.shape_cast %67 : vector<256xf32> to vector<1x256xf32>
    %cst_74 = arith.constant 0.000000e+00 : f32
    %69 = vector.broadcast %cst_74 : f32 to vector<1x32xf32>
    %cst_75 = arith.constant 0.000000e+00 : f32
    %70 = vector.broadcast %cst_75 : f32 to vector<1x32xf32>
    %71 = vector.extract_strided_slice %65 {offsets = [0, 0], sizes = [1, 32], strides = [1, 1]} : vector<1x256xf32> to vector<1x32xf32>
    %72 = arith.addf %69, %71 : vector<1x32xf32>
    %73 = vector.extract_strided_slice %68 {offsets = [0, 0], sizes = [1, 32], strides = [1, 1]} : vector<1x256xf32> to vector<1x32xf32>
    %74 = arith.addf %70, %73 : vector<1x32xf32>
    %75 = vector.extract_strided_slice %65 {offsets = [0, 32], sizes = [1, 32], strides = [1, 1]} : vector<1x256xf32> to vector<1x32xf32>
    %76 = arith.addf %72, %75 : vector<1x32xf32>
    %77 = vector.extract_strided_slice %68 {offsets = [0, 32], sizes = [1, 32], strides = [1, 1]} : vector<1x256xf32> to vector<1x32xf32>
    %78 = arith.addf %74, %77 : vector<1x32xf32>
    %79 = vector.extract_strided_slice %65 {offsets = [0, 64], sizes = [1, 32], strides = [1, 1]} : vector<1x256xf32> to vector<1x32xf32>
    %80 = arith.addf %76, %79 : vector<1x32xf32>
    %81 = vector.extract_strided_slice %68 {offsets = [0, 64], sizes = [1, 32], strides = [1, 1]} : vector<1x256xf32> to vector<1x32xf32>
    %82 = arith.addf %78, %81 : vector<1x32xf32>
    %83 = vector.extract_strided_slice %65 {offsets = [0, 96], sizes = [1, 32], strides = [1, 1]} : vector<1x256xf32> to vector<1x32xf32>
    %84 = arith.addf %80, %83 : vector<1x32xf32>
    %85 = vector.extract_strided_slice %68 {offsets = [0, 96], sizes = [1, 32], strides = [1, 1]} : vector<1x256xf32> to vector<1x32xf32>
    %86 = arith.addf %82, %85 : vector<1x32xf32>
    %87 = vector.extract_strided_slice %65 {offsets = [0, 128], sizes = [1, 32], strides = [1, 1]} : vector<1x256xf32> to vector<1x32xf32>
    %88 = arith.addf %84, %87 : vector<1x32xf32>
    %89 = vector.extract_strided_slice %68 {offsets = [0, 128], sizes = [1, 32], strides = [1, 1]} : vector<1x256xf32> to vector<1x32xf32>
    %90 = arith.addf %86, %89 : vector<1x32xf32>
    %91 = vector.extract_strided_slice %65 {offsets = [0, 160], sizes = [1, 32], strides = [1, 1]} : vector<1x256xf32> to vector<1x32xf32>
    %92 = arith.addf %88, %91 : vector<1x32xf32>
    %93 = vector.extract_strided_slice %68 {offsets = [0, 160], sizes = [1, 32], strides = [1, 1]} : vector<1x256xf32> to vector<1x32xf32>
    %94 = arith.addf %90, %93 : vector<1x32xf32>
    %95 = vector.extract_strided_slice %65 {offsets = [0, 192], sizes = [1, 32], strides = [1, 1]} : vector<1x256xf32> to vector<1x32xf32>
    %96 = arith.addf %92, %95 : vector<1x32xf32>
    %97 = vector.extract_strided_slice %68 {offsets = [0, 192], sizes = [1, 32], strides = [1, 1]} : vector<1x256xf32> to vector<1x32xf32>
    %98 = arith.addf %94, %97 : vector<1x32xf32>
    %99 = vector.extract_strided_slice %65 {offsets = [0, 224], sizes = [1, 32], strides = [1, 1]} : vector<1x256xf32> to vector<1x32xf32>
    %100 = arith.addf %96, %99 : vector<1x32xf32>
    %101 = vector.extract_strided_slice %68 {offsets = [0, 224], sizes = [1, 32], strides = [1, 1]} : vector<1x256xf32> to vector<1x32xf32>
    %102 = arith.addf %98, %101 : vector<1x32xf32>
    %cst_76 = arith.constant 0.001953125 : f32
    %103 = vector.broadcast %cst_76 : f32 to vector<1x32xf32>
    %104 = arith.mulf %100, %103 : vector<1x32xf32>
    %cst_77 = arith.constant 0.001953125 : f32
    %105 = vector.broadcast %cst_77 : f32 to vector<1x32xf32>
    %106 = arith.mulf %102, %105 : vector<1x32xf32>
    %107 = arith.mulf %104, %104 : vector<1x32xf32>
    %108 = arith.subf %106, %107 : vector<1x32xf32>
    %cst_78 = arith.constant 9.99999974E-6 : f32
    %109 = vector.broadcast %cst_78 : f32 to vector<1x32xf32>
    %110 = arith.addf %108, %109 : vector<1x32xf32>
    %111 = math.rsqrt %110 : vector<1x32xf32>
    %112 = tpu.concatenate %104, %104, %104, %104, %104, %104, %104, %104 in 1 : vector<1x32xf32>, vector<1x32xf32>, vector<1x32xf32>, vector<1x32xf32>, vector<1x32xf32>, vector<1x32xf32>, vector<1x32xf32>, vector<1x32xf32> -> vector<1x256xf32>
    %113 = tpu.concatenate %111, %111, %111, %111, %111, %111, %111, %111 in 1 : vector<1x32xf32>, vector<1x32xf32>, vector<1x32xf32>, vector<1x32xf32>, vector<1x32xf32>, vector<1x32xf32>, vector<1x32xf32>, vector<1x32xf32> -> vector<1x256xf32>
    %114 = vector.broadcast %112 : vector<1x256xf32> to vector<64x256xf32>
    %115 = arith.subf %63, %114 : vector<64x256xf32>
    %116 = vector.broadcast %113 : vector<1x256xf32> to vector<64x256xf32>
    %117 = arith.mulf %115, %116 : vector<64x256xf32>
    %cst_79 = arith.constant 0.000000e+00 : f32
    %118 = vector.broadcast %cst_79 : f32 to vector<64x256xf32>
    %119 = arith.maximumf %117, %118 : vector<64x256xf32>
    %c0_80 = arith.constant 0 : index
    %c0_81 = arith.constant 0 : index
    %c0_82 = arith.constant 0 : index
    %120 = vector.load %arg3[%c0_80, %c0_81, %c0_82] : memref<1x64x256xf32, #tpu.memory_space<vmem>>, vector<1x64x256xf32>
    %121 = vector.shape_cast %120 : vector<1x64x256xf32> to vector<64x256xf32>
    %122 = vector.shape_cast %119 : vector<64x256xf32> to vector<1x64x256xf32>
    tpu.vector_store %arg3[%c0_80, %c0_81, %c0_82], %122 {strides = array<i32>} : memref<1x64x256xf32, #tpu.memory_space<vmem>>, vector<1x64x256xf32>,
    return
  }
  func.func @transform_0(%arg0: i32) -> (i32, i32, i32, i32, i32) {
    %c0_i32 = arith.constant 0 : i32
    %c0_i32_0 = arith.constant 0 : i32
    %c0_i32_1 = arith.constant 0 : i32
    %c0_i32_2 = arith.constant 0 : i32
    %c0_i32_3 = arith.constant 0 : i32
    return %arg0, %c0_i32, %c0_i32_0, %c0_i32_1, %c0_i32_2 : i32, i32, i32, i32, i32
  }
  func.func @transform_1(%arg0: i32) -> (i32, i32, i32) {
    %c0_i32 = arith.constant 0 : i32
    %c0_i32_0 = arith.constant 0 : i32
    %c0_i32_1 = arith.constant 0 : i32
    %c0_i32_2 = arith.constant 0 : i32
    return %c0_i32, %c0_i32_0, %c0_i32_1 : i32, i32, i32
  }
  func.func @transform_2(%arg0: i32) -> (i32, i32, i32) {
    %c0_i32 = arith.constant 0 : i32
    %c0_i32_0 = arith.constant 0 : i32
    %c0_i32_1 = arith.constant 0 : i32
    return %arg0, %c0_i32, %c0_i32_0 : i32, i32, i32
  }
}

</mosaic_0001>

<llo_original>
// kernel: conv3d_block.1
$region0: #{conv3d_block.1}
  #allocation0 [shape = 'u32[]', space=smem, size = 0x4, offset = 0x4, fixed_abs, tag = 'smem constant byte address 0x4 - core index']
  #allocation1 [shape = 'u32[144,128]{1,0:T(1,128)}', space=vmem, size = 0x12000, scoped, tag = 'internal scratch']
  %s0 = inlined_call_operand.vmem [shape: f32[2,3,10,8,160], index: 0, kind: input, shape index: {}]
  %s1 = inlined_call_operand.vmem [shape: f32[9,160,256], index: 1, kind: input, shape index: {}]
  %s2 = inlined_call_operand.vmem [shape: f32[2,64,256], index: 2, kind: output, shape index: {}]
  %s3 = sld [smem:[#allocation0]]
  $region41: #{conv3d_block.1} parent=0
    _
  %s5 = ssub.s32 1, %s3
  %s6 = scalar_select 0, %s5, %s3
  loop: start=0, step=1, limit=4
  $region2: #{conv3d_block.1} parent=0 // loop_pre_header
    _
  $region3: #{conv3d_block.1} parent=0 // loop_header
    %s8 = sphi 0, %s12
    %p9 = scmp.ge.s32.totalorder %s8, 4
    %s18 = sphi 0, %s20
    %s21 = sphi 0, %s18
    %s22 = sphi 0, %s21
    %s38 = sphi 0, %s22
    %s42 = sphi 0, %s42
    %s44 = sphi 0, %s42
    %s45 = sphi 0, %s44
    %s59 = sphi 0, %s45
    %s65 = sphi 0, %s67
    %s68 = sphi 0, %s65
    %s69 = sphi 0, %s68
    %s85 = sphi 0, %s69
  $region4: #{conv3d_block.1} parent=0 // loop_header_branch
    %11 = sbr.rel (%p9) target = $region8
  $region5: #{conv3d_block.1} parent=0 // loop_body
    %s13 = ssub.s32 %s8, 1
    %s14 = ssub.s32 %s8, 2
    %s15 = sadd.s32 %s8, 1
    %s16 = ssub.s32 %s8, %s15
    %p17 = scmp.eq.s32.totalorder %s16, 0
    %s19 = sadd.s32 %s18, 1
    %s20 = scalar_select %p17, %s18, %s19
    %p23 = pneg %p17
    %p24 = scmp.eq.s32.totalorder %s8, 1
    %p25 = por %p23, %p24
    %p26 = scmp.ne.s32.totalorder %s18, %s21
    %p27 = scmp.eq.s32.totalorder %s8, 0
    %p28 = por %p26, %p27
    %p29 = scmp.ne.s32.totalorder %s18, %s21
    %p30 = scmp.eq.s32.totalorder %s13, 1
    %p31 = por %p29, %p30
    %p32 = scmp.ne.s32.totalorder %s21, %s22
    %p33 = scmp.eq.s32.totalorder %s13, 0
    %p34 = por %p32, %p33
    %p35 = scmp.ne.s32.totalorder %s21, %s22
    %p36 = scmp.eq.s32.totalorder %s14, 1
    %p37 = por %p35, %p36
    %p39 = scmp.ne.s32.totalorder %s22, %s38
    %p40 = scmp.eq.s32.totalorder %s14, 0
    %p41 = por %p39, %p40
    %s43 = sadd.s32 %s42, 1
    %p46 = scmp.eq.s32.totalorder %s8, 1
    %p47 = scmp.ne.s32.totalorder %s42, %s44
    %p48 = scmp.eq.s32.totalorder %s8, 0
    %p49 = por %p47, %p48
    %p50 = scmp.ne.s32.totalorder %s42, %s44
    %p51 = scmp.eq.s32.totalorder %s13, 1
    %p52 = por %p50, %p51
    %p53 = scmp.ne.s32.totalorder %s44, %s45
    %p54 = scmp.eq.s32.totalorder %s13, 0
    %p55 = por %p53, %p54
    %p56 = scmp.ne.s32.totalorder %s44, %s45
    %p57 = scmp.eq.s32.totalorder %s14, 1
    %p58 = por %p56, %p57
    %p60 = scmp.ne.s32.totalorder %s45, %s59
    %p61 = scmp.eq.s32.totalorder %s14, 0
    %p62 = por %p60, %p61
    %s63 = ssub.s32 %s8, %s15
    %p64 = scmp.eq.s32.totalorder %s63, 0
    %s66 = sadd.s32 %s65, 1
    %s67 = scalar_select %p64, %s65, %s66
    %p70 = pneg %p64
    %p71 = scmp.eq.s32.totalorder %s8, 1
    %p72 = por %p70, %p71
    %p73 = scmp.ne.s32.totalorder %s65, %s68
    %p74 = scmp.eq.s32.totalorder %s8, 0
    %p75 = por %p73, %p74
    %p76 = scmp.ne.s32.totalorder %s65, %s68
    %p77 = scmp.eq.s32.totalorder %s13, 1
    %p78 = por %p76, %p77
    %p79 = scmp.ne.s32.totalorder %s68, %s69
    %p80 = scmp.eq.s32.totalorder %s13, 0
    %p81 = por %p79, %p80
    %p82 = scmp.ne.s32.totalorder %s68, %s69
    %p83 = scmp.eq.s32.totalorder %s14, 1
    %p84 = por %p82, %p83
    %p86 = scmp.ne.s32.totalorder %s69, %s85
    %p87 = scmp.eq.s32.totalorder %s14, 0
    %p88 = por %p86, %p87
    %p89 = scmp.le.s32.totalorder 1, %s8
    %p90 = scmp.lt.s32.totalorder %s8, 3
    %p91 = pnand %p89, %p90
    %p92 = pneg %p91
    // Predicated region
    $region9: #{conv3d_block.1} parent=5 // pred_check
      _
    $region10: #{conv3d_block.1} parent=5 // pred_check_branch
      %94 = sbr.rel (%p91) target = $region12
    $region11: #{conv3d_block.1} parent=5 // pred_region
      %s95 = ssub.s32 %s8, 1
      // Predicated region
      $region13: #{conv3d_block.1} parent=11 // pred_check
        %p96 = pneg %p55
      $region14: #{conv3d_block.1} parent=11 // pred_check_branch
        %98 = sbr.rel (%p96) target = $region16
      $region15: #{conv3d_block.1} parent=11 // pred_region
        _
      $region16: #{conv3d_block.1} parent=11 // pred_fallthru
        _
    $region12: #{conv3d_block.1} parent=5 // pred_fallthru
      _
    %p99 = scmp.lt.s32.totalorder %s8, 2
    // Predicated region
    $region17: #{conv3d_block.1} parent=5 // pred_check
      %p100 = pneg %p99
    $region18: #{conv3d_block.1} parent=5 // pred_check_branch
      %102 = sbr.rel (%p100) target = $region20
    $region19: #{conv3d_block.1} parent=5 // pred_region
      // Predicated region
      $region21: #{conv3d_block.1} parent=19 // pred_check
        %p103 = pneg %p28
      $region22: #{conv3d_block.1} parent=19 // pred_check_branch
        %105 = sbr.rel (%p103) target = $region24
      $region23: #{conv3d_block.1} parent=19 // pred_region
        %p106 = scmp.lt.s32.totalorder %s8, 1
        %s107 = scalar_select %p106, %s8, 1
        %s108 = smul.addr %s107, 60
        %s109 = smul.addr %s108, 8
        %s110 = scalar_lea.vmem %s0, %s109
      $region24: #{conv3d_block.1} parent=19 // pred_fallthru
        _
    $region20: #{conv3d_block.1} parent=5 // pred_fallthru
      _
    %p111 = scmp.le.s32.totalorder 1, %s8
    %p112 = scmp.lt.s32.totalorder %s8, 3
    %p113 = pnand %p111, %p112
    %p114 = pneg %p113
    // Predicated region
    $region25: #{conv3d_block.1} parent=5 // pred_check
      _
    $region26: #{conv3d_block.1} parent=5 // pred_check_branch
      %116 = sbr.rel (%p113) target = $region28
    $region27: #{conv3d_block.1} parent=5 // pred_region
      %s117 = ssub.s32 %s8, 1
      %p118 = scmp.lt.s32.totalorder %s13, 1
      %s119 = scalar_select %p118, %s13, 1
      %s120 = smul.addr %s119, 60
      %s121 = smul.addr %s120, 8
      %s122 = scalar_lea.vmem %s0, %s121
      %p123 = pneg %p34
      %p124 = pneg %p31
      %p125 = pneg %p55
      %p126 = pneg %p52
      %p127 = pneg %p81
      %p128 = pneg %p78
      %p129 = scmp.lt.s32.totalorder %s13, 1
      %s130 = scalar_select %p129, %s13, 1
      %s131 = smul.addr %s130, 16
      %s132 = smul.addr %s131, 8
      %s133 = scalar_lea.vmem %s2, %s132
      %p134 = scmp.lt.s32.totalorder %s13, 1
      %s135 = scalar_select %p134, %s13, 1
      %s136 = smul.addr %s135, 60
      %s137 = smul.addr %s136, 8
      %s138 = scalar_lea.vmem %s0, %s137
      %p139 = scmp.lt.s32.totalorder %s13, 1
      %s140 = scalar_select %p139, %s13, 1
      %s141 = smul.addr %s140, 16
      %s142 = smul.addr %s141, 8
      %s143 = scalar_lea.vmem %s2, %s142
      %v144 = vld [vmem:[%s138] sm:$0xff]
      %v145 = vld [vmem:[%s138 + $0x8] sm:$0xff]
      %v146 = vld [vmem:[%s138 + $0x10] sm:$0xff]
      %v147 = vld [vmem:[%s138 + $0x18] sm:$0xff]
      %v148 = vld [vmem:[%s138 + $0x20] sm:$0xff]
      %v149 = vld [vmem:[%s138 + $0x28] sm:$0xff]
      %v150 = vld [vmem:[%s138 + $0x30] sm:$0xff]
      %v151 = vld [vmem:[%s138 + $0x38] sm:$0xff]
      %v152 = vld [vmem:[%s138 + $0x40] sm:$0xff]
      %v153 = vld [vmem:[%s138 + $0x48] sm:$0xff]
      %v154 = vld [vmem:[%s138 + $0x50] sm:$0xff]
      %v155 = vld [vmem:[%s138 + $0x58] sm:$0xff]
      %v156 = vld [vmem:[%s138 + $0x60] sm:$0xff]
      %v157 = vld [vmem:[%s138 + $0x68] sm:$0xff]
      %v158 = vld [vmem:[%s138 + $0x70] sm:$0xff]
      %v159 = vld [vmem:[%s138 + $0x78] sm:$0xff]
      %v160 = vld [vmem:[%s1] sm:$0xff]
      %v161 = vld [vmem:[%s1 + $0x8] sm:$0xff]
      %v162 = vld [vmem:[%s1 + $0x10] sm:$0xff]
      %v163 = vld [vmem:[%s1 + $0x18] sm:$0xff]
      %v164 = vld [vmem:[%s1 + $0x20] sm:$0xff]
      %v165 = vld [vmem:[%s1 + $0x28] sm:$0xff]
      %v166 = vld [vmem:[%s1 + $0x30] sm:$0xff]
      %v167 = vld [vmem:[%s1 + $0x38] sm:$0xff]
      %v168 = vld [vmem:[%s1 + $0x40] sm:$0xff]
      %v169 = vld [vmem:[%s1 + $0x48] sm:$0xff]
      %v170 = vld [vmem:[%s1 + $0x50] sm:$0xff]
      %v171 = vld [vmem:[%s1 + $0x58] sm:$0xff]
      %v172 = vld [vmem:[%s1 + $0x60] sm:$0xff]
      %v173 = vld [vmem:[%s1 + $0x68] sm:$0xff]
      %v174 = vld [vmem:[%s1 + $0x70] sm:$0xff]
      %v175 = vld [vmem:[%s1 + $0x78] sm:$0xff]
      %v176 = vld [vmem:[%s1 + $0x80] sm:$0xff]
      %v177 = vld [vmem:[%s1 + $0x88] sm:$0xff]
      %v178 = vld [vmem:[%s1 + $0x90] sm:$0xff]
      %v179 = vld [vmem:[%s1 + $0x98] sm:$0xff]
      %v180 = vld [vmem:[%s1 + $0xa0] sm:$0xff]
      %v181 = vld [vmem:[%s1 + $0xa8] sm:$0xff]
      %v182 = vld [vmem:[%s1 + $0xb0] sm:$0xff]
      %v183 = vld [vmem:[%s1 + $0xb8] sm:$0xff]
      %v184 = vld [vmem:[%s1 + $0xc0] sm:$0xff]
      %v185 = vld [vmem:[%s1 + $0xc8] sm:$0xff]
      %v186 = vld [vmem:[%s1 + $0xd0] sm:$0xff]
      %v187 = vld [vmem:[%s1 + $0xd8] sm:$0xff]
      %v188 = vld [vmem:[%s1 + $0xe0] sm:$0xff]
      %v189 = vld [vmem:[%s1 + $0xe8] sm:$0xff]
      %v190 = vld [vmem:[%s1 + $0xf0] sm:$0xff]
      %v191 = vld [vmem:[%s1 + $0xf8] sm:$0xff]
      %v192 = vld [vmem:[%s1 + $0x100] sm:$0xff]
      %v193 = vld [vmem:[%s1 + $0x108] sm:$0xff]
      %v194 = vld [vmem:[%s1 + $0x110] sm:$0xff]
      %v195 = vld [vmem:[%s1 + $0x118] sm:$0xff]
      %v196 = vld [vmem:[%s1 + $0x120] sm:$0xff]
      %v197 = vld [vmem:[%s1 + $0x128] sm:$0xff]
      %v198 = vld [vmem:[%s1 + $0x130] sm:$0xff]
      %v199 = vld [vmem:[%s1 + $0x138] sm:$0xff]
      %s200 = scalar_lea.vmem %s138, 160
      %v201 = vld [vmem:[%s200] sm:$0xff]
      %v202 = vld [vmem:[%s200 + $0x8] sm:$0xff]
      %v203 = vld [vmem:[%s200 + $0x10] sm:$0xff]
      %v204 = vld [vmem:[%s200 + $0x18] sm:$0xff]
      %v205 = vld [vmem:[%s200 + $0x20] sm:$0xff]
      %v206 = vld [vmem:[%s200 + $0x28] sm:$0xff]
      %v207 = vld [vmem:[%s200 + $0x30] sm:$0xff]
      %v208 = vld [vmem:[%s200 + $0x38] sm:$0xff]
      %v209 = vld [vmem:[%s200 + $0x40] sm:$0xff]
      %v210 = vld [vmem:[%s200 + $0x48] sm:$0xff]
      %v211 = vld [vmem:[%s200 + $0x50] sm:$0xff]
      %v212 = vld [vmem:[%s200 + $0x58] sm:$0xff]
      %v213 = vld [vmem:[%s200 + $0x60] sm:$0xff]
      %v214 = vld [vmem:[%s200 + $0x68] sm:$0xff]
      %v215 = vld [vmem:[%s200 + $0x70] sm:$0xff]
      %v216 = vld [vmem:[%s200 + $0x78] sm:$0xff]
      %s217 = scalar_lea.vmem %s1, 320
      %v218 = vld [vmem:[%s217] sm:$0xff]
      %v219 = vld [vmem:[%s217 + $0x8] sm:$0xff]
      %v220 = vld [vmem:[%s217 + $0x10] sm:$0xff]
      %v221 = vld [vmem:[%s217 + $0x18] sm:$0xff]
      %v222 = vld [vmem:[%s217 + $0x20] sm:$0xff]
      %v223 = vld [vmem:[%s217 + $0x28] sm:$0xff]
      %v224 = vld [vmem:[%s217 + $0x30] sm:$0xff]
      %v225 = vld [vmem:[%s217 + $0x38] sm:$0xff]
      %v226 = vld [vmem:[%s217 + $0x40] sm:$0xff]
      %v227 = vld [vmem:[%s217 + $0x48] sm:$0xff]
      %v228 = vld [vmem:[%s217 + $0x50] sm:$0xff]
      %v229 = vld [vmem:[%s217 + $0x58] sm:$0xff]
      %v230 = vld [vmem:[%s217 + $0x60] sm:$0xff]
      %v231 = vld [vmem:[%s217 + $0x68] sm:$0xff]
      %v232 = vld [vmem:[%s217 + $0x70] sm:$0xff]
      %v233 = vld [vmem:[%s217 + $0x78] sm:$0xff]
      %v234 = vld [vmem:[%s217 + $0x80] sm:$0xff]
      %v235 = vld [vmem:[%s217 + $0x88] sm:$0xff]
      %v236 = vld [vmem:[%s217 + $0x90] sm:$0xff]
      %v237 = vld [vmem:[%s217 + $0x98] sm:$0xff]
      %v238 = vld [vmem:[%s217 + $0xa0] sm:$0xff]
      %v239 = vld [vmem:[%s217 + $0xa8] sm:$0xff]
      %v240 = vld [vmem:[%s217 + $0xb0] sm:$0xff]
      %v241 = vld [vmem:[%s217 + $0xb8] sm:$0xff]
      %v242 = vld [vmem:[%s217 + $0xc0] sm:$0xff]
      %v243 = vld [vmem:[%s217 + $0xc8] sm:$0xff]
      %v244 = vld [vmem:[%s217 + $0xd0] sm:$0xff]
      %v245 = vld [vmem:[%s217 + $0xd8] sm:$0xff]
      %v246 = vld [vmem:[%s217 + $0xe0] sm:$0xff]
      %v247 = vld [vmem:[%s217 + $0xe8] sm:$0xff]
      %v248 = vld [vmem:[%s217 + $0xf0] sm:$0xff]
      %v249 = vld [vmem:[%s217 + $0xf8] sm:$0xff]
      %v250 = vld [vmem:[%s217 + $0x100] sm:$0xff]
      %v251 = vld [vmem:[%s217 + $0x108] sm:$0xff]
      %v252 = vld [vmem:[%s217 + $0x110] sm:$0xff]
      %v253 = vld [vmem:[%s217 + $0x118] sm:$0xff]
      %v254 = vld [vmem:[%s217 + $0x120] sm:$0xff]
      %v255 = vld [vmem:[%s217 + $0x128] sm:$0xff]
      %v256 = vld [vmem:[%s217 + $0x130] sm:$0xff]
      %v257 = vld [vmem:[%s217 + $0x138] sm:$0xff]
      %vm258 = vcmask 261120
      %v260 = vsel %vm258, %v202, 0
      %v263 = vsel %vm258, %v204, 0
      %v266 = vsel %vm258, %v206, 0
      %v269 = vsel %vm258, %v208, 0
      %v272 = vsel %vm258, %v210, 0
      %v275 = vsel %vm258, %v212, 0
      %v278 = vsel %vm258, %v214, 0
      %v281 = vsel %vm258, %v216, 0
      %283 = vmatprep.subr.mxu0 %v219
      %284 = vmatpush1.msra.mxu0 %v218
      %285 = vmatprep.subr.mxu0 %v221
      %286 = vmatpush1.msra.mxu0 %v220
      %287 = vmatprep.subr.mxu0 %v223
      %288 = vmatpush1.msra.mxu0 %v222
      %289 = vmatprep.subr.mxu0 %v225
      %290 = vmatpush1.msra.mxu0 %v224
      %291 = vmatprep.subr.mxu0 %v227
      %292 = vmatpush1.msra.mxu0 %v226
      %293 = vmatprep.subr.mxu0 %v229
      %294 = vmatpush1.msra.mxu0 %v228
      %295 = vmatprep.subr.mxu0 %v231
      %296 = vmatpush1.msra.mxu0 %v230
      %297 = vmatprep.subr.mxu0 %v233
      %298 = vmatpush1.msra.mxu0 %v232
      %299 = vmatprep.subr.mxu0 %v235
      %300 = vmatpush1.msra.mxu0 %v234
      %301 = vmatprep.subr.mxu0 %v237
      %302 = vmatpush1.msra.mxu0 %v236
      %303 = vmatprep.subr.mxu0 %v239
      %304 = vmatpush1.msra.mxu0 %v238
      %305 = vmatprep.subr.mxu0 %v241
      %306 = vmatpush1.msra.mxu0 %v240
      %307 = vmatprep.subr.mxu0 %v243
      %308 = vmatpush1.msra.mxu0 %v242
      %309 = vmatprep.subr.mxu0 %v245
      %310 = vmatpush1.msra.mxu0 %v244
      %311 = vmatprep.subr.mxu0 %v247
      %312 = vmatpush1.msra.mxu0 %v246
      %313 = vmatprep.subr.mxu0 %v249
      %314 = vmatpush1.msra.mxu0 %v248
      %315 = vmatprep.subr.mxu0 %v251
      %316 = vmatpush1.msra.mxu0 %v250
      %317 = vmatprep.subr.mxu0 %v253
      %318 = vmatpush1.msra.mxu0 %v252
      %319 = vmatprep.subr.mxu0 %v255
      %320 = vmatpush1.msra.mxu0 %v254
      %321 = vmatprep.subr.mxu0 %v257
      %322 = vmatpush1.msra.mxu0 %v256
      %323 = vmatprep.subr.mxu0 0.0
      %324 = vmatpush1.msra.mxu0 0.0
      %325 = vmatprep.subr.mxu0 0.0
      %326 = vmatpush1.msra.mxu0 0.0
      %327 = vmatprep.subr.mxu0 0.0
      %328 = vmatpush1.msra.mxu0 0.0
      %329 = vmatprep.subr.mxu0 0.0
      %330 = vmatpush1.msra.mxu0 0.0
      %331 = vmatprep.subr.mxu0 0.0
      %332 = vmatpush1.msra.mxu0 0.0
      %333 = vmatprep.subr.mxu0 0.0
      %334 = vmatpush1.msra.mxu0 0.0
      %335 = vmatprep.subr.mxu0 0.0
      %336 = vmatpush1.msra.mxu0 0.0
      %337 = vmatprep.subr.mxu0 0.0
      %338 = vmatpush1.msra.mxu0 0.0
      %339 = vmatprep.subr.mxu0 0.0
      %340 = vmatpush1.msra.mxu0 0.0
      %341 = vmatprep.subr.mxu0 0.0
      %342 = vmatpush1.msra.mxu0 0.0
      %343 = vmatprep.subr.mxu0 0.0
      %344 = vmatpush1.msra.mxu0 0.0
      %345 = vmatprep.subr.mxu0 0.0
      %346 = vmatpush1.msra.mxu0 0.0
      %347 = vmatprep.mubr.f32.mxu0 %v260
      %348 = vmatmul.mubr.f32.gmra.mrb[0].mxu0 %v201
      %v349 = vpop.f32.mrb[0].mxu0
      %v350 = vadd.f32 0.0, %v349
      %v351 = vpop.f32.mrb[0].mxu0
      %v352 = vadd.f32 0.0, %v351
      %353 = vmatprep.mubr.f32.mxu0 %v263
      %354 = vmatmul.mubr.f32.gmra.mrb[0].mxu0 %v203
      %v355 = vpop.f32.mrb[0].mxu0
      %v356 = vadd.f32 0.0, %v355
      %v357 = vpop.f32.mrb[0].mxu0
      %v358 = vadd.f32 0.0, %v357
      %359 = vmatprep.mubr.f32.mxu0 %v266
      %360 = vmatmul.mubr.f32.gmra.mrb[0].mxu0 %v205
      %v361 = vpop.f32.mrb[0].mxu0
      %v362 = vadd.f32 0.0, %v361
      %v363 = vpop.f32.mrb[0].mxu0
      %v364 = vadd.f32 0.0, %v363
      %365 = vmatprep.mubr.f32.mxu0 %v269
      %366 = vmatmul.mubr.f32.gmra.mrb[0].mxu0 %v207
      %v367 = vpop.f32.mrb[0].mxu0
      %v368 = vadd.f32 0.0, %v367
      %v369 = vpop.f32.mrb[0].mxu0
      %v370 = vadd.f32 0.0, %v369
      %371 = vmatprep.mubr.f32.mxu0 %v272
      %372 = vmatmul.mubr.f32.gmra.mrb[0].mxu0 %v209
      %v373 = vpop.f32.mrb[0].mxu0
      %v374 = vadd.f32 0.0, %v373
      %v375 = vpop.f32.mrb[0].mxu0
      %v376 = vadd.f32 0.0, %v375
      %377 = vmatprep.mubr.f32.mxu0 %v275
      %378 = vmatmul.mubr.f32.gmra.mrb[0].mxu0 %v211
      %v379 = vpop.f32.mrb[0].mxu0
      %v380 = vadd.f32 0.0, %v379
      %v381 = vpop.f32.mrb[0].mxu0
      %v382 = vadd.f32 0.0, %v381
      %383 = vmatprep.mubr.f32.mxu0 %v278
      %384 = vmatmul.mubr.f32.gmra.mrb[0].mxu0 %v213
      %v385 = vpop.f32.mrb[0].mxu0
      %v386 = vadd.f32 0.0, %v385
      %v387 = vpop.f32.mrb[0].mxu0
      %v388 = vadd.f32 0.0, %v387
      %389 = vmatprep.mubr.f32.mxu0 %v281
      %390 = vmatmul.mubr.f32.gmra.mrb[0].mxu0 %v215
      %v391 = vpop.f32.mrb[0].mxu0
      %v392 = vadd.f32 0.0, %v391
      %v393 = vpop.f32.mrb[0].mxu0
      %v394 = vadd.f32 0.0, %v393
      %395 = vdwg.mxu0
      %v397 = vsel %vm258, %v145, 0
      %v400 = vsel %vm258, %v147, 0
      %v403 = vsel %vm258, %v149, 0
      %v406 = vsel %vm258, %v151, 0
      %v409 = vsel %vm258, %v153, 0
      %v412 = vsel %vm258, %v155, 0
      %v415 = vsel %vm258, %v157, 0
      %v418 = vsel %vm258, %v159, 0
      %420 = vmatprep.subr.mxu0 %v161
      %421 = vmatpush1.msra.mxu0 %v160
      %422 = vmatprep.subr.mxu0 %v163
      %423 = vmatpush1.msra.mxu0 %v162
      %424 = vmatprep.subr.mxu0 %v165
      %425 = vmatpush1.msra.mxu0 %v164
      %426 = vmatprep.subr.mxu0 %v167
      %427 = vmatpush1.msra.mxu0 %v166
      %428 = vmatprep.subr.mxu0 %v169
      %429 = vmatpush1.msra.mxu0 %v168
      %430 = vmatprep.subr.mxu0 %v171
      %431 = vmatpush1.msra.mxu0 %v170
      %432 = vmatprep.subr.mxu0 %v173
      %433 = vmatpush1.msra.mxu0 %v172
      %434 = vmatprep.subr.mxu0 %v175
      %435 = vmatpush1.msra.mxu0 %v174
      %436 = vmatprep.subr.mxu0 %v177
      %437 = vmatpush1.msra.mxu0 %v176
      %438 = vmatprep.subr.mxu0 %v179
      %439 = vmatpush1.msra.mxu0 %v178
      %440 = vmatprep.subr.mxu0 %v181
      %441 = vmatpush1.msra.mxu0 %v180
      %442 = vmatprep.subr.mxu0 %v183
      %443 = vmatpush1.msra.mxu0 %v182
      %444 = vmatprep.subr.mxu0 %v185
      %445 = vmatpush1.msra.mxu0 %v184
      %446 = vmatprep.subr.mxu0 %v187
      %447 = vmatpush1.msra.mxu0 %v186
      %448 = vmatprep.subr.mxu0 %v189
      %449 = vmatpush1.msra.mxu0 %v188
      %450 = vmatprep.subr.mxu0 %v191
      %451 = vmatpush1.msra.mxu0 %v190
      %452 = vmatprep.subr.mxu0 %v193
      %453 = vmatpush1.msra.mxu0 %v192
      %454 = vmatprep.subr.mxu0 %v195
      %455 = vmatpush1.msra.mxu0 %v194
      %456 = vmatprep.subr.mxu0 %v197
      %457 = vmatpush1.msra.mxu0 %v196
      %458 = vmatprep.subr.mxu0 %v199
      %459 = vmatpush1.msra.mxu0 %v198
      %460 = vmatprep.subr.mxu0 0.0
      %461 = vmatpush1.msra.mxu0 0.0
      %462 = vmatprep.subr.mxu0 0.0
      %463 = vmatpush1.msra.mxu0 0.0
      %464 = vmatprep.subr.mxu0 0.0
      %465 = vmatpush1.msra.mxu0 0.0
      %466 = vmatprep.subr.mxu0 0.0
      %467 = vmatpush1.msra.mxu0 0.0
      %468 = vmatprep.subr.mxu0 0.0
      %469 = vmatpush1.msra.mxu0 0.0
      %470 = vmatprep.subr.mxu0 0.0
      %471 = vmatpush1.msra.mxu0 0.0
      %472 = vmatprep.subr.mxu0 0.0
      %473 = vmatpush1.msra.mxu0 0.0
      %474 = vmatprep.subr.mxu0 0.0
      %475 = vmatpush1.msra.mxu0 0.0
      %476 = vmatprep.subr.mxu0 0.0
      %477 = vmatpush1.msra.mxu0 0.0
      %478 = vmatprep.subr.mxu0 0.0
      %479 = vmatpush1.msra.mxu0 0.0
      %480 = vmatprep.subr.mxu0 0.0
      %481 = vmatpush1.msra.mxu0 0.0
      %482 = vmatprep.subr.mxu0 0.0
      %483 = vmatpush1.msra.mxu0 0.0
      %484 = vmatprep.mubr.f32.mxu0 %v397
      %485 = vmatmul.mubr.f32.gmra.mrb[0].mxu0 %v144
      %v486 = vpop.f32.mrb[0].mxu0
      %v487 = vadd.f32 %v350, %v486
      %v488 = vpop.f32.mrb[0].mxu0
      %v489 = vadd.f32 %v352, %v488
      %490 = vmatprep.mubr.f32.mxu0 %v400
      %491 = vmatmul.mubr.f32.gmra.mrb[0].mxu0 %v146
      %v492 = vpop.f32.mrb[0].mxu0
      %v493 = vadd.f32 %v356, %v492
      %v494 = vpop.f32.mrb[0].mxu0
      %v495 = vadd.f32 %v358, %v494
      %496 = vmatprep.mubr.f32.mxu0 %v403
      %497 = vmatmul.mubr.f32.gmra.mrb[0].mxu0 %v148
      %v498 = vpop.f32.mrb[0].mxu0
      %v499 = vadd.f32 %v362, %v498
      %v500 = vpop.f32.mrb[0].mxu0
      %v501 = vadd.f32 %v364, %v500
      %502 = vmatprep.mubr.f32.mxu0 %v406
      %503 = vmatmul.mubr.f32.gmra.mrb[0].mxu0 %v150
      %v504 = vpop.f32.mrb[0].mxu0
      %v505 = vadd.f32 %v368, %v504
      %v506 = vpop.f32.mrb[0].mxu0
      %v507 = vadd.f32 %v370, %v506
      %508 = vmatprep.mubr.f32.mxu0 %v409
      %509 = vmatmul.mubr.f32.gmra.mrb[0].mxu0 %v152
      %v510 = vpop.f32.mrb[0].mxu0
      %v511 = vadd.f32 %v374, %v510
      %v512 = vpop.f32.mrb[0].mxu0
      %v513 = vadd.f32 %v376, %v512
      %514 = vmatprep.mubr.f32.mxu0 %v412
      %515 = vmatmul.mubr.f32.gmra.mrb[0].mxu0 %v154
      %v516 = vpop.f32.mrb[0].mxu0
      %v517 = vadd.f32 %v380, %v516
      %v518 = vpop.f32.mrb[0].mxu0
      %v519 = vadd.f32 %v382, %v518
      %520 = vmatprep.mubr.f32.mxu0 %v415
      %521 = vmatmul.mubr.f32.gmra.mrb[0].mxu0 %v156
      %v522 = vpop.f32.mrb[0].mxu0
      %v523 = vadd.f32 %v386, %v522
      %v524 = vpop.f32.mrb[0].mxu0
      %v525 = vadd.f32 %v388, %v524
      %526 = vmatprep.mubr.f32.mxu0 %v418
      %527 = vmatmul.mubr.f32.gmra.mrb[0].mxu0 %v158
      %v528 = vpop.f32.mrb[0].mxu0
      %v529 = vadd.f32 %v392, %v528
      %v530 = vpop.f32.mrb[0].mxu0
      %v531 = vadd.f32 %v394, %v530
      %532 = vdwg.mxu0
      %s533 = scalar_lea.vmem %s138, 320
      %v534 = vld [vmem:[%s533] sm:$0xff]
      %v535 = vld [vmem:[%s533 + $0x8] sm:$0xff]
      %v536 = vld [vmem:[%s533 + $0x10] sm:$0xff]
      %v537 = vld [vmem:[%s533 + $0x18] sm:$0xff]
      %v538 = vld [vmem:[%s533 + $0x20] sm:$0xff]
      %v539 = vld [vmem:[%s533 + $0x28] sm:$0xff]
      %v540 = vld [vmem:[%s533 + $0x30] sm:$0xff]
      %v541 = vld [vmem:[%s533 + $0x38] sm:$0xff]
      %v542 = vld [vmem:[%s533 + $0x40] sm:$0xff]
      %v543 = vld [vmem:[%s533 + $0x48] sm:$0xff]
      %v544 = vld [vmem:[%s533 + $0x50] sm:$0xff]
      %v545 = vld [vmem:[%s533 + $0x58] sm:$0xff]
      %v546 = vld [vmem:[%s533 + $0x60] sm:$0xff]
      %v547 = vld [vmem:[%s533 + $0x68] sm:$0xff]
      %v548 = vld [vmem:[%s533 + $0x70] sm:$0xff]
      %v549 = vld [vmem:[%s533 + $0x78] sm:$0xff]
      %s550 = scalar_lea.vmem %s1, 640
      %v551 = vld [vmem:[%s550] sm:$0xff]
      %v552 = vld [vmem:[%s550 + $0x8] sm:$0xff]
      %v553 = vld [vmem:[%s550 + $0x10] sm:$0xff]
      %v554 = vld [vmem:[%s550 + $0x18] sm:$0xff]
      %v555 = vld [vmem:[%s550 + $0x20] sm:$0xff]
      %v556 = vld [vmem:[%s550 + $0x28] sm:$0xff]
      %v557 = vld [vmem:[%s550 + $0x30] sm:$0xff]
      %v558 = vld [vmem:[%s550 + $0x38] sm:$0xff]
      %v559 = vld [vmem:[%s550 + $0x40] sm:$0xff]
      %v560 = vld [vmem:[%s550 + $0x48] sm:$0xff]
      %v561 = vld [vmem:[%s550 + $0x50] sm:$0xff]
      %v562 = vld [vmem:[%s550 + $0x58] sm:$0xff]
      %v563 = vld [vmem:[%s550 + $0x60] sm:$0xff]
      %v564 = vld [vmem:[%s550 + $0x68] sm:$0xff]
      %v565 = vld [vmem:[%s550 + $0x70] sm:$0xff]
      %v566 = vld [vmem:[%s550 + $0x78] sm:$0xff]
      %v567 = vld [vmem:[%s550 + $0x80] sm:$0xff]
      %v568 = vld [vmem:[%s550 + $0x88] sm:$0xff]
      %v569 = vld [vmem:[%s550 + $0x90] sm:$0xff]
      %v570 = vld [vmem:[%s550 + $0x98] sm:$0xff]
      %v571 = vld [vmem:[%s550 + $0xa0] sm:$0xff]
      %v572 = vld [vmem:[%s550 + $0xa8] sm:$0xff]
      %v573 = vld [vmem:[%s550 + $0xb0] sm:$0xff]
      %v574 = vld [vmem:[%s550 + $0xb8] sm:$0xff]
      %v575 = vld [vmem:[%s550 + $0xc0] sm:$0xff]
      %v576 = vld [vmem:[%s550 + $0xc8] sm:$0xff]
      %v577 = vld [vmem:[%s550 + $0xd0] sm:$0xff]
      %v578 = vld [vmem:[%s550 + $0xd8] sm:$0xff]
      %v579 = vld [vmem:[%s550 + $0xe0] sm:$0xff]
      %v580 = vld [vmem:[%s550 + $0xe8] sm:$0xff]
      %v581 = vld [vmem:[%s550 + $0xf0] sm:$0xff]
      %v582 = vld [vmem:[%s550 + $0xf8] sm:$0xff]
      %v583 = vld [vmem:[%s550 + $0x100] sm:$0xff]
      %v584 = vld [vmem:[%s550 + $0x108] sm:$0xff]
      %v585 = vld [vmem:[%s550 + $0x110] sm:$0xff]
      %v586 = vld [vmem:[%s550 + $0x118] sm:$0xff]
      %v587 = vld [vmem:[%s550 + $0x120] sm:$0xff]
      %v588 = vld [vmem:[%s550 + $0x128] sm:$0xff]
      %v589 = vld [vmem:[%s550 + $0x130] sm:$0xff]
      %v590 = vld [vmem:[%s550 + $0x138] sm:$0xff]
      %v592 = vsel %vm258, %v535, 0
      %v595 = vsel %vm258, %v537, 0
      %v598 = vsel %vm258, %v539, 0
      %v601 = vsel %vm258, %v541, 0
      %v604 = vsel %vm258, %v543, 0
      %v607 = vsel %vm258, %v545, 0
      %v610 = vsel %vm258, %v547, 0
      %v613 = vsel %vm258, %v549, 0
      %615 = vmatprep.subr.mxu0 %v552
      %616 = vmatpush1.msra.mxu0 %v551
      %617 = vmatprep.subr.mxu0 %v554
      %618 = vmatpush1.msra.mxu0 %v553
      %619 = vmatprep.subr.mxu0 %v556
      %620 = vmatpush1.msra.mxu0 %v555
      %621 = vmatprep.subr.mxu0 %v558
      %622 = vmatpush1.msra.mxu0 %v557
      %623 = vmatprep.subr.mxu0 %v560
      %624 = vmatpush1.msra.mxu0 %v559
      %625 = vmatprep.subr.mxu0 %v562
      %626 = vmatpush1.msra.mxu0 %v561
      %627 = vmatprep.subr.mxu0 %v564
      %628 = vmatpush1.msra.mxu0 %v563
      %629 = vmatprep.subr.mxu0 %v566
      %630 = vmatpush1.msra.mxu0 %v565
      %631 = vmatprep.subr.mxu0 %v568
      %632 = vmatpush1.msra.mxu0 %v567
      %633 = vmatprep.subr.mxu0 %v570
      %634 = vmatpush1.msra.mxu0 %v569
      %635 = vmatprep.subr.mxu0 %v572
      %636 = vmatpush1.msra.mxu0 %v571
      %637 = vmatprep.subr.mxu0 %v574
      %638 = vmatpush1.msra.mxu0 %v573
      %639 = vmatprep.subr.mxu0 %v576
      %640 = vmatpush1.msra.mxu0 %v575
      %641 = vmatprep.subr.mxu0 %v578
      %642 = vmatpush1.msra.mxu0 %v577
      %643 = vmatprep.subr.mxu0 %v580
      %644 = vmatpush1.msra.mxu0 %v579
      %645 = vmatprep.subr.mxu0 %v582
      %646 = vmatpush1.msra.mxu0 %v581
      %647 = vmatprep.subr.mxu0 %v584
      %648 = vmatpush1.msra.mxu0 %v583
      %649 = vmatprep.subr.mxu0 %v586
      %650 = vmatpush1.msra.mxu0 %v585
      %651 = vmatprep.subr.mxu0 %v588
      %652 = vmatpush1.msra.mxu0 %v587
      %653 = vmatprep.subr.mxu0 %v590
      %654 = vmatpush1.msra.mxu0 %v589
      %655 = vmatprep.subr.mxu0 0.0
      %656 = vmatpush1.msra.mxu0 0.0
      %657 = vmatprep.subr.mxu0 0.0
      %658 = vmatpush1.msra.mxu0 0.0
      %659 = vmatprep.subr.mxu0 0.0
      %660 = vmatpush1.msra.mxu0 0.0
      %661 = vmatprep.subr.mxu0 0.0
      %662 = vmatpush1.msra.mxu0 0.0
      %663 = vmatprep.subr.mxu0 0.0
      %664 = vmatpush1.msra.mxu0 0.0
      %665 = vmatprep.subr.mxu0 0.0
      %666 = vmatpush1.msra.mxu0 0.0
      %667 = vmatprep.subr.mxu0 0.0
      %668 = vmatpush1.msra.mxu0 0.0
      %669 = vmatprep.subr.mxu0 0.0
      %670 = vmatpush1.msra.mxu0 0.0
      %671 = vmatprep.subr.mxu0 0.0
      %672 = vmatpush1.msra.mxu0 0.0
      %673 = vmatprep.subr.mxu0 0.0
      %674 = vmatpush1.msra.mxu0 0.0
      %675 = vmatprep.subr.mxu0 0.0
      %676 = vmatpush1.msra.mxu0 0.0
      %677 = vmatprep.subr.mxu0 0.0
      %678 = vmatpush1.msra.mxu0 0.0
      %679 = vmatprep.mubr.f32.mxu0 %v592
      %680 = vmatmul.mubr.f32.gmra.mrb[0].mxu0 %v534
      %v681 = vpop.f32.mrb[0].mxu0
      %v682 = vadd.f32 0.0, %v681
      %v683 = vpop.f32.mrb[0].mxu0
      %v684 = vadd.f32 0.0, %v683
      %685 = vmatprep.mubr.f32.mxu0 %v595
      %686 = vmatmul.mubr.f32.gmra.mrb[0].mxu0 %v536
      %v687 = vpop.f32.mrb[0].mxu0
      %v688 = vadd.f32 0.0, %v687
      %v689 = vpop.f32.mrb[0].mxu0
      %v690 = vadd.f32 0.0, %v689
      %691 = vmatprep.mubr.f32.mxu0 %v598
      %692 = vmatmul.mubr.f32.gmra.mrb[0].mxu0 %v538
      %v693 = vpop.f32.mrb[0].mxu0
      %v694 = vadd.f32 0.0, %v693
      %v695 = vpop.f32.mrb[0].mxu0
      %v696 = vadd.f32 0.0, %v695
      %697 = vmatprep.mubr.f32.mxu0 %v601
      %698 = vmatmul.mubr.f32.gmra.mrb[0].mxu0 %v540
      %v699 = vpop.f32.mrb[0].mxu0
      %v700 = vadd.f32 0.0, %v699
      %v701 = vpop.f32.mrb[0].mxu0
      %v702 = vadd.f32 0.0, %v701
      %703 = vmatprep.mubr.f32.mxu0 %v604
      %704 = vmatmul.mubr.f32.gmra.mrb[0].mxu0 %v542
      %v705 = vpop.f32.mrb[0].mxu0
      %v706 = vadd.f32 0.0, %v705
      %v707 = vpop.f32.mrb[0].mxu0
      %v708 = vadd.f32 0.0, %v707
      %709 = vmatprep.mubr.f32.mxu0 %v607
      %710 = vmatmul.mubr.f32.gmra.mrb[0].mxu0 %v544
      %v711 = vpop.f32.mrb[0].mxu0
      %v712 = vadd.f32 0.0, %v711
      %v713 = vpop.f32.mrb[0].mxu0
      %v714 = vadd.f32 0.0, %v713
      %715 = vmatprep.mubr.f32.mxu0 %v610
      %716 = vmatmul.mubr.f32.gmra.mrb[0].mxu0 %v546
      %v717 = vpop.f32.mrb[0].mxu0
      %v718 = vadd.f32 0.0, %v717
      %v719 = vpop.f32.mrb[0].mxu0
      %v720 = vadd.f32 0.0, %v719
      %721 = vmatprep.mubr.f32.mxu0 %v613
      %722 = vmatmul.mubr.f32.gmra.mrb[0].mxu0 %v548
      %v723 = vpop.f32.mrb[0].mxu0
      %v724 = vadd.f32 0.0, %v723
      %v725 = vpop.f32.mrb[0].mxu0
      %v726 = vadd.f32 0.0, %v725
      %727 = vdwg.mxu0
      %v728 = vadd.f32 %v487, %v682
      %v729 = vadd.f32 %v489, %v684
      %v730 = vadd.f32 %v493, %v688
      %v731 = vadd.f32 %v495, %v690
      %v732 = vadd.f32 %v499, %v694
      %v733 = vadd.f32 %v501, %v696
      %v734 = vadd.f32 %v505, %v700
      %v735 = vadd.f32 %v507, %v702
      %v736 = vadd.f32 %v511, %v706
      %v737 = vadd.f32 %v513, %v708
      %v738 = vadd.f32 %v517, %v712
      %v739 = vadd.f32 %v519, %v714
      %v740 = vadd.f32 %v523, %v718
      %v741 = vadd.f32 %v525, %v720
      %v742 = vadd.f32 %v529, %v724
      %v743 = vadd.f32 %v531, %v726
      %s744 = scalar_lea.vmem %s138, 16
      %v745 = vld [vmem:[%s744] sm:$0xff]
      %v746 = vld [vmem:[%s744 + $0x8] sm:$0xff]
      %v747 = vld [vmem:[%s744 + $0x10] sm:$0xff]
      %v748 = vld [vmem:[%s744 + $0x18] sm:$0xff]
      %v749 = vld [vmem:[%s744 + $0x20] sm:$0xff]
      %v750 = vld [vmem:[%s744 + $0x28] sm:$0xff]
      %v751 = vld [vmem:[%s744 + $0x30] sm:$0xff]
      %v752 = vld [vmem:[%s744 + $0x38] sm:$0xff]
      %v753 = vld [vmem:[%s744 + $0x40] sm:$0xff]
      %v754 = vld [vmem:[%s744 + $0x48] sm:$0xff]
      %v755 = vld [vmem:[%s744 + $0x50] sm:$0xff]
      %v756 = vld [vmem:[%s744 + $0x58] sm:$0xff]
      %v757 = vld [vmem:[%s744 + $0x60] sm:$0xff]
      %v758 = vld [vmem:[%s744 + $0x68] sm:$0xff]
      %v759 = vld [vmem:[%s744 + $0x70] sm:$0xff]
      %v760 = vld [vmem:[%s744 + $0x78] sm:$0xff]
      %s761 = scalar_lea.vmem %s1, 960
      %v762 = vld [vmem:[%s761] sm:$0xff]
      %v763 = vld [vmem:[%s761 + $0x8] sm:$0xff]
      %v764 = vld [vmem:[%s761 + $0x10] sm:$0xff]
      %v765 = vld [vmem:[%s761 + $0x18] sm:$0xff]
      %v766 = vld [vmem:[%s761 + $0x20] sm:$0xff]
      %v767 = vld [vmem:[%s761 + $0x28] sm:$0xff]
      %v768 = vld [vmem:[%s761 + $0x30] sm:$0xff]
      %v769 = vld [vmem:[%s761 + $0x38] sm:$0xff]
      %v770 = vld [vmem:[%s761 + $0x40] sm:$0xff]
      %v771 = vld [vmem:[%s761 + $0x48] sm:$0xff]
      %v772 = vld [vmem:[%s761 + $0x50] sm:$0xff]
      %v773 = vld [vmem:[%s761 + $0x58] sm:$0xff]
      %v774 = vld [vmem:[%s761 + $0x60] sm:$0xff]
      %v775 = vld [vmem:[%s761 + $0x68] sm:$0xff]
      %v776 = vld [vmem:[%s761 + $0x70] sm:$0xff]
      %v777 = vld [vmem:[%s761 + $0x78] sm:$0xff]
      %v778 = vld [vmem:[%s761 + $0x80] sm:$0xff]
      %v779 = vld [vmem:[%s761 + $0x88] sm:$0xff]
      %v780 = vld [vmem:[%s761 + $0x90] sm:$0xff]
      %v781 = vld [vmem:[%s761 + $0x98] sm:$0xff]
      %v782 = vld [vmem:[%s761 + $0xa0] sm:$0xff]
      %v783 = vld [vmem:[%s761 + $0xa8] sm:$0xff]
      %v784 = vld [vmem:[%s761 + $0xb0] sm:$0xff]
      %v785 = vld [vmem:[%s761 + $0xb8] sm:$0xff]
      %v786 = vld [vmem:[%s761 + $0xc0] sm:$0xff]
      %v787 = vld [vmem:[%s761 + $0xc8] sm:$0xff]
      %v788 = vld [vmem:[%s761 + $0xd0] sm:$0xff]
      %v789 = vld [vmem:[%s761 + $0xd8] sm:$0xff]
      %v790 = vld [vmem:[%s761 + $0xe0] sm:$0xff]
      %v791 = vld [vmem:[%s761 + $0xe8] sm:$0xff]
      %v792 = vld [vmem:[%s761 + $0xf0] sm:$0xff]
      %v793 = vld [vmem:[%s761 + $0xf8] sm:$0xff]
      %v794 = vld [vmem:[%s761 + $0x100] sm:$0xff]
      %v795 = vld [vmem:[%s761 + $0x108] sm:$0xff]
      %v796 = vld [vmem:[%s761 + $0x110] sm:$0xff]
      %v797 = vld [vmem:[%s761 + $0x118] sm:$0xff]
      %v798 = vld [vmem:[%s761 + $0x120] sm:$0xff]
      %v799 = vld [vmem:[%s761 + $0x128] sm:$0xff]
      %v800 = vld [vmem:[%s761 + $0x130] sm:$0xff]
      %v801 = vld [vmem:[%s761 + $0x138] sm:$0xff]
      %v803 = vsel %vm258, %v746, 0
      %v806 = vsel %vm258, %v748, 0
      %v809 = vsel %vm258, %v750, 0
      %v812 = vsel %vm258, %v752, 0
      %v815 = vsel %vm258, %v754, 0
      %v818 = vsel %vm258, %v756, 0
      %v821 = vsel %vm258, %v758, 0
      %v824 = vsel %vm258, %v760, 0
      %826 = vmatprep.subr.mxu0 %v763
      %827 = vmatpush1.msra.mxu0 %v762
      %828 = vmatprep.subr.mxu0 %v765
      %829 = vmatpush1.msra.mxu0 %v764
      %830 = vmatprep.subr.mxu0 %v767
      %831 = vmatpush1.msra.mxu0 %v766
      %832 = vmatprep.subr.mxu0 %v769
      %833 = vmatpush1.msra.mxu0 %v768
      %834 = vmatprep.subr.mxu0 %v771
      %835 = vmatpush1.msra.mxu0 %v770
      %836 = vmatprep.subr.mxu0 %v773
      %837 = vmatpush1.msra.mxu0 %v772
      %838 = vmatprep.subr.mxu0 %v775
      %839 = vmatpush1.msra.mxu0 %v774
      %840 = vmatprep.subr.mxu0 %v777
      %841 = vmatpush1.msra.mxu0 %v776
      %842 = vmatprep.subr.mxu0 %v779
      %843 = vmatpush1.msra.mxu0 %v778
      %844 = vmatprep.subr.mxu0 %v781
      %845 = vmatpush1.msra.mxu0 %v780
      %846 = vmatprep.subr.mxu0 %v783
      %847 = vmatpush1.msra.mxu0 %v782
      %848 = vmatprep.subr.mxu0 %v785
      %849 = vmatpush1.msra.mxu0 %v784
      %850 = vmatprep.subr.mxu0 %v787
      %851 = vmatpush1.msra.mxu0 %v786
      %852 = vmatprep.subr.mxu0 %v789
      %853 = vmatpush1.msra.mxu0 %v788
      %854 = vmatprep.subr.mxu0 %v791
      %855 = vmatpush1.msra.mxu0 %v790
      %856 = vmatprep.subr.mxu0 %v793
      %857 = vmatpush1.msra.mxu0 %v792
      %858 = vmatprep.subr.mxu0 %v795
      %859 = vmatpush1.msra.mxu0 %v794
      %860 = vmatprep.subr.mxu0 %v797
      %861 = vmatpush1.msra.mxu0 %v796
      %862 = vmatprep.subr.mxu0 %v799
      %863 = vmatpush1.msra.mxu0 %v798
      %864 = vmatprep.subr.mxu0 %v801
      %865 = vmatpush1.msra.mxu0 %v800
      %866 = vmatprep.subr.mxu0 0.0
      %867 = vmatpush1.msra.mxu0 0.0
      %868 = vmatprep.subr.mxu0 0.0
      %869 = vmatpush1.msra.mxu0 0.0
      %870 = vmatprep.subr.mxu0 0.0
      %871 = vmatpush1.msra.mxu0 0.0
      %872 = vmatprep.subr.mxu0 0.0
      %873 = vmatpush1.msra.mxu0 0.0
      %874 = vmatprep.subr.mxu0 0.0
      %875 = vmatpush1.msra.mxu0 0.0
      %876 = vmatprep.subr.mxu0 0.0
      %877 = vmatpush1.msra.mxu0 0.0
      %878 = vmatprep.subr.mxu0 0.0
      %879 = vmatpush1.msra.mxu0 0.0
      %880 = vmatprep.subr.mxu0 0.0
      %881 = vmatpush1.msra.mxu0 0.0
      %882 = vmatprep.subr.mxu0 0.0
      %883 = vmatpush1.msra.mxu0 0.0
      %884 = vmatprep.subr.mxu0 0.0
      %885 = vmatpush1.msra.mxu0 0.0
      %886 = vmatprep.subr.mxu0 0.0
      %887 = vmatpush1.msra.mxu0 0.0
      %888 = vmatprep.subr.mxu0 0.0
      %889 = vmatpush1.msra.mxu0 0.0
      %890 = vmatprep.mubr.f32.mxu0 %v803
      %891 = vmatmul.mubr.f32.gmra.mrb[0].mxu0 %v745
      %v892 = vpop.f32.mrb[0].mxu0
      %v893 = vadd.f32 0.0, %v892
      %v894 = vpop.f32.mrb[0].mxu0
      %v895 = vadd.f32 0.0, %v894
      %896 = vmatprep.mubr.f32.mxu0 %v806
      %897 = vmatmul.mubr.f32.gmra.mrb[0].mxu0 %v747
      %v898 = vpop.f32.mrb[0].mxu0
      %v899 = vadd.f32 0.0, %v898
      %v900 = vpop.f32.mrb[0].mxu0
      %v901 = vadd.f32 0.0, %v900
      %902 = vmatprep.mubr.f32.mxu0 %v809
      %903 = vmatmul.mubr.f32.gmra.mrb[0].mxu0 %v749
      %v904 = vpop.f32.mrb[0].mxu0
      %v905 = vadd.f32 0.0, %v904
      %v906 = vpop.f32.mrb[0].mxu0
      %v907 = vadd.f32 0.0, %v906
      %908 = vmatprep.mubr.f32.mxu0 %v812
      %909 = vmatmul.mubr.f32.gmra.mrb[0].mxu0 %v751
      %v910 = vpop.f32.mrb[0].mxu0
      %v911 = vadd.f32 0.0, %v910
      %v912 = vpop.f32.mrb[0].mxu0
      %v913 = vadd.f32 0.0, %v912
      %914 = vmatprep.mubr.f32.mxu0 %v815
      %915 = vmatmul.mubr.f32.gmra.mrb[0].mxu0 %v753
      %v916 = vpop.f32.mrb[0].mxu0
      %v917 = vadd.f32 0.0, %v916
      %v918 = vpop.f32.mrb[0].mxu0
      %v919 = vadd.f32 0.0, %v918
      %920 = vmatprep.mubr.f32.mxu0 %v818
      %921 = vmatmul.mubr.f32.gmra.mrb[0].mxu0 %v755
      %v922 = vpop.f32.mrb[0].mxu0
      %v923 = vadd.f32 0.0, %v922
      %v924 = vpop.f32.mrb[0].mxu0
      %v925 = vadd.f32 0.0, %v924
      %926 = vmatprep.mubr.f32.mxu0 %v821
      %927 = vmatmul.mubr.f32.gmra.mrb[0].mxu0 %v757
      %v928 = vpop.f32.mrb[0].mxu0
      %v929 = vadd.f32 0.0, %v928
      %v930 = vpop.f32.mrb[0].mxu0
      %v931 = vadd.f32 0.0, %v930
      %932 = vmatprep.mubr.f32.mxu0 %v824
      %933 = vmatmul.mubr.f32.gmra.mrb[0].mxu0 %v759
      %v934 = vpop.f32.mrb[0].mxu0
      %v935 = vadd.f32 0.0, %v934
      %v936 = vpop.f32.mrb[0].mxu0
      %v937 = vadd.f32 0.0, %v936
      %938 = vdwg.mxu0
      %v939 = vadd.f32 %v728, %v893
      %v940 = vadd.f32 %v729, %v895
      %v941 = vadd.f32 %v730, %v899
      %v942 = vadd.f32 %v731, %v901
      %v943 = vadd.f32 %v732, %v905
      %v944 = vadd.f32 %v733, %v907
      %v945 = vadd.f32 %v734, %v911
      %v946 = vadd.f32 %v735, %v913
      %v947 = vadd.f32 %v736, %v917
      %v948 = vadd.f32 %v737, %v919
      %v949 = vadd.f32 %v738, %v923
      %v950 = vadd.f32 %v739, %v925
      %v951 = vadd.f32 %v740, %v929
      %v952 = vadd.f32 %v741, %v931
      %v953 = vadd.f32 %v742, %v935
      %v954 = vadd.f32 %v743, %v937
      %s955 = scalar_lea.vmem %s138, 176
      %v956 = vld [vmem:[%s955] sm:$0xff]
      %v957 = vld [vmem:[%s955 + $0x8] sm:$0xff]
      %v958 = vld [vmem:[%s955 + $0x10] sm:$0xff]
      %v959 = vld [vmem:[%s955 + $0x18] sm:$0xff]
      %v960 = vld [vmem:[%s955 + $0x20] sm:$0xff]
      %v961 = vld [vmem:[%s955 + $0x28] sm:$0xff]
      %v962 = vld [vmem:[%s955 + $0x30] sm:$0xff]
      %v963 = vld [vmem:[%s955 + $0x38] sm:$0xff]
      %v964 = vld [vmem:[%s955 + $0x40] sm:$0xff]
      %v965 = vld [vmem:[%s955 + $0x48] sm:$0xff]
      %v966 = vld [vmem:[%s955 + $0x50] sm:$0xff]
      %v967 = vld [vmem:[%s955 + $0x58] sm:$0xff]
      %v968 = vld [vmem:[%s955 + $0x60] sm:$0xff]
      %v969 = vld [vmem:[%s955 + $0x68] sm:$0xff]
      %v970 = vld [vmem:[%s955 + $0x70] sm:$0xff]
      %v971 = vld [vmem:[%s955 + $0x78] sm:$0xff]
      %s972 = scalar_lea.vmem %s1, 1280
      %v973 = vld [vmem:[%s972] sm:$0xff]
      %v974 = vld [vmem:[%s972 + $0x8] sm:$0xff]
      %v975 = vld [vmem:[%s972 + $0x10] sm:$0xff]
      %v976 = vld [vmem:[%s972 + $0x18] sm:$0xff]
      %v977 = vld [vmem:[%s972 + $0x20] sm:$0xff]
      %v978 = vld [vmem:[%s972 + $0x28] sm:$0xff]
      %v979 = vld [vmem:[%s972 + $0x30] sm:$0xff]
      %v980 = vld [vmem:[%s972 + $0x38] sm:$0xff]
      %v981 = vld [vmem:[%s972 + $0x40] sm:$0xff]
      %v982 = vld [vmem:[%s972 + $0x48] sm:$0xff]
      %v983 = vld [vmem:[%s972 + $0x50] sm:$0xff]
      %v984 = vld [vmem:[%s972 + $0x58] sm:$0xff]
      %v985 = vld [vmem:[%s972 + $0x60] sm:$0xff]
      %v986 = vld [vmem:[%s972 + $0x68] sm:$0xff]
      %v987 = vld [vmem:[%s972 + $0x70] sm:$0xff]
      %v988 = vld [vmem:[%s972 + $0x78] sm:$0xff]
      %v989 = vld [vmem:[%s972 + $0x80] sm:$0xff]
      %v990 = vld [vmem:[%s972 + $0x88] sm:$0xff]
      %v991 = vld [vmem:[%s972 + $0x90] sm:$0xff]
      %v992 = vld [vmem:[%s972 + $0x98] sm:$0xff]
      %v993 = vld [vmem:[%s972 + $0xa0] sm:$0xff]
      %v994 = vld [vmem:[%s972 + $0xa8] sm:$0xff]
      %v995 = vld [vmem:[%s972 + $0xb0] sm:$0xff]
      %v996 = vld [vmem:[%s972 + $0xb8] sm:$0xff]
      %v997 = vld [vmem:[%s972 + $0xc0] sm:$0xff]
      %v998 = vld [vmem:[%s972 + $0xc8] sm:$0xff]
      %v999 = vld [vmem:[%s972 + $0xd0] sm:$0xff]
      %v1000 = vld [vmem:[%s972 + $0xd8] sm:$0xff]
      %v1001 = vld [vmem:[%s972 + $0xe0] sm:$0xff]
      %v1002 = vld [vmem:[%s972 + $0xe8] sm:$0xff]
      %v1003 = vld [vmem:[%s972 + $0xf0] sm:$0xff]
      %v1004 = vld [vmem:[%s972 + $0xf8] sm:$0xff]
      %v1005 = vld [vmem:[%s972 + $0x100] sm:$0xff]
      %v1006 = vld [vmem:[%s972 + $0x108] sm:$0xff]
      %v1007 = vld [vmem:[%s972 + $0x110] sm:$0xff]
      %v1008 = vld [vmem:[%s972 + $0x118] sm:$0xff]
      %v1009 = vld [vmem:[%s972 + $0x120] sm:$0xff]
      %v1010 = vld [vmem:[%s972 + $0x128] sm:$0xff]
      %v1011 = vld [vmem:[%s972 + $0x130] sm:$0xff]
      %v1012 = vld [vmem:[%s972 + $0x138] sm:$0xff]
      %v1014 = vsel %vm258, %v957, 0
      %v1017 = vsel %vm258, %v959, 0
      %v1020 = vsel %vm258, %v961, 0
      %v1023 = vsel %vm258, %v963, 0
      %v1026 = vsel %vm258, %v965, 0
      %v1029 = vsel %vm258, %v967, 0
      %v1032 = vsel %vm258, %v969, 0
      %v1035 = vsel %vm258, %v971, 0
      %1037 = vmatprep.subr.mxu0 %v974
      %1038 = vmatpush1.msra.mxu0 %v973
      %1039 = vmatprep.subr.mxu0 %v976
      %1040 = vmatpush1.msra.mxu0 %v975
      %1041 = vmatprep.subr.mxu0 %v978
      %1042 = vmatpush1.msra.mxu0 %v977
      %1043 = vmatprep.subr.mxu0 %v980
      %1044 = vmatpush1.msra.mxu0 %v979
      %1045 = vmatprep.subr.mxu0 %v982
      %1046 = vmatpush1.msra.mxu0 %v981
      %1047 = vmatprep.subr.mxu0 %v984
      %1048 = vmatpush1.msra.mxu0 %v983
      %1049 = vmatprep.subr.mxu0 %v986
      %1050 = vmatpush1.msra.mxu0 %v985
      %1051 = vmatprep.subr.mxu0 %v988
      %1052 = vmatpush1.msra.mxu0 %v987
      %1053 = vmatprep.subr.mxu0 %v990
      %1054 = vmatpush1.msra.mxu0 %v989
      %1055 = vmatprep.subr.mxu0 %v992
      %1056 = vmatpush1.msra.mxu0 %v991
      %1057 = vmatprep.subr.mxu0 %v994
      %1058 = vmatpush1.msra.mxu0 %v993
      %1059 = vmatprep.subr.mxu0 %v996
      %1060 = vmatpush1.msra.mxu0 %v995
      %1061 = vmatprep.subr.mxu0 %v998
      %1062 = vmatpush1.msra.mxu0 %v997
      %1063 = vmatprep.subr.mxu0 %v1000
      %1064 = vmatpush1.msra.mxu0 %v999
      %1065 = vmatprep.subr.mxu0 %v1002
      %1066 = vmatpush1.msra.mxu0 %v1001
      %1067 = vmatprep.subr.mxu0 %v1004
      %1068 = vmatpush1.msra.mxu0 %v1003
      %1069 = vmatprep.subr.mxu0 %v1006
      %1070 = vmatpush1.msra.mxu0 %v1005
      %1071 = vmatprep.subr.mxu0 %v1008
      %1072 = vmatpush1.msra.mxu0 %v1007
      %1073 = vmatprep.subr.mxu0 %v1010
      %1074 = vmatpush1.msra.mxu0 %v1009
      %1075 = vmatprep.subr.mxu0 %v1012
      %1076 = vmatpush1.msra.mxu0 %v1011
      %1077 = vmatprep.subr.mxu0 0.0
      %1078 = vmatpush1.msra.mxu0 0.0
      %1079 = vmatprep.subr.mxu0 0.0
      %1080 = vmatpush1.msra.mxu0 0.0
      %1081 = vmatprep.subr.mxu0 0.0
      %1082 = vmatpush1.msra.mxu0 0.0
      %1083 = vmatprep.subr.mxu0 0.0
      %1084 = vmatpush1.msra.mxu0 0.0
      %1085 = vmatprep.subr.mxu0 0.0
      %1086 = vmatpush1.msra.mxu0 0.0
      %1087 = vmatprep.subr.mxu0 0.0
      %1088 = vmatpush1.msra.mxu0 0.0
      %1089 = vmatprep.subr.mxu0 0.0
      %1090 = vmatpush1.msra.mxu0 0.0
      %1091 = vmatprep.subr.mxu0 0.0
      %1092 = vmatpush1.msra.mxu0 0.0
      %1093 = vmatprep.subr.mxu0 0.0
      %1094 = vmatpush1.msra.mxu0 0.0
      %1095 = vmatprep.subr.mxu0 0.0
      %1096 = vmatpush1.msra.mxu0 0.0
      %1097 = vmatprep.subr.mxu0 0.0
      %1098 = vmatpush1.msra.mxu0 0.0
      %1099 = vmatprep.subr.mxu0 0.0
      %1100 = vmatpush1.msra.mxu0 0.0
      %1101 = vmatprep.mubr.f32.mxu0 %v1014
      %1102 = vmatmul.mubr.f32.gmra.mrb[0].mxu0 %v956
      %v1103 = vpop.f32.mrb[0].mxu0
      %v1104 = vadd.f32 0.0, %v1103
      %v1105 = vpop.f32.mrb[0].mxu0
      %v1106 = vadd.f32 0.0, %v1105
      %1107 = vmatprep.mubr.f32.mxu0 %v1017
      %1108 = vmatmul.mubr.f32.gmra.mrb[0].mxu0 %v958
      %v1109 = vpop.f32.mrb[0].mxu0
      %v1110 = vadd.f32 0.0, %v1109
      %v1111 = vpop.f32.mrb[0].mxu0
      %v1112 = vadd.f32 0.0, %v1111
      %1113 = vmatprep.mubr.f32.mxu0 %v1020
      %1114 = vmatmul.mubr.f32.gmra.mrb[0].mxu0 %v960
      %v1115 = vpop.f32.mrb[0].mxu0
      %v1116 = vadd.f32 0.0, %v1115
      %v1117 = vpop.f32.mrb[0].mxu0
      %v1118 = vadd.f32 0.0, %v1117
      %1119 = vmatprep.mubr.f32.mxu0 %v1023
      %1120 = vmatmul.mubr.f32.gmra.mrb[0].mxu0 %v962
      %v1121 = vpop.f32.mrb[0].mxu0
      %v1122 = vadd.f32 0.0, %v1121
      %v1123 = vpop.f32.mrb[0].mxu0
      %v1124 = vadd.f32 0.0, %v1123
      %1125 = vmatprep.mubr.f32.mxu0 %v1026
      %1126 = vmatmul.mubr.f32.gmra.mrb[0].mxu0 %v964
      %v1127 = vpop.f32.mrb[0].mxu0
      %v1128 = vadd.f32 0.0, %v1127
      %v1129 = vpop.f32.mrb[0].mxu0
      %v1130 = vadd.f32 0.0, %v1129
      %1131 = vmatprep.mubr.f32.mxu0 %v1029
      %1132 = vmatmul.mubr.f32.gmra.mrb[0].mxu0 %v966
      %v1133 = vpop.f32.mrb[0].mxu0
      %v1134 = vadd.f32 0.0, %v1133
      %v1135 = vpop.f32.mrb[0].mxu0
      %v1136 = vadd.f32 0.0, %v1135
      %1137 = vmatprep.mubr.f32.mxu0 %v1032
      %1138 = vmatmul.mubr.f32.gmra.mrb[0].mxu0 %v968
      %v1139 = vpop.f32.mrb[0].mxu0
      %v1140 = vadd.f32 0.0, %v1139
      %v1141 = vpop.f32.mrb[0].mxu0
      %v1142 = vadd.f32 0.0, %v1141
      %1143 = vmatprep.mubr.f32.mxu0 %v1035
      %1144 = vmatmul.mubr.f32.gmra.mrb[0].mxu0 %v970
      %v1145 = vpop.f32.mrb[0].mxu0
      %v1146 = vadd.f32 0.0, %v1145
      %v1147 = vpop.f32.mrb[0].mxu0
      %v1148 = vadd.f32 0.0, %v1147
      %1149 = vdwg.mxu0
      %v1150 = vadd.f32 %v939, %v1104
      %v1151 = vadd.f32 %v940, %v1106
      %v1152 = vadd.f32 %v941, %v1110
      %v1153 = vadd.f32 %v942, %v1112
      %v1154 = vadd.f32 %v943, %v1116
      %v1155 = vadd.f32 %v944, %v1118
      %v1156 = vadd.f32 %v945, %v1122
      %v1157 = vadd.f32 %v946, %v1124
      %v1158 = vadd.f32 %v947, %v1128
      %v1159 = vadd.f32 %v948, %v1130
      %v1160 = vadd.f32 %v949, %v1134
      %v1161 = vadd.f32 %v950, %v1136
      %v1162 = vadd.f32 %v951, %v1140
      %v1163 = vadd.f32 %v952, %v1142
      %v1164 = vadd.f32 %v953, %v1146
      %v1165 = vadd.f32 %v954, %v1148
      %s1166 = scalar_lea.vmem %s138, 336
      %v1167 = vld [vmem:[%s1166] sm:$0xff]
      %v1168 = vld [vmem:[%s1166 + $0x8] sm:$0xff]
      %v1169 = vld [vmem:[%s1166 + $0x10] sm:$0xff]
      %v1170 = vld [vmem:[%s1166 + $0x18] sm:$0xff]
      %v1171 = vld [vmem:[%s1166 + $0x20] sm:$0xff]
      %v1172 = vld [vmem:[%s1166 + $0x28] sm:$0xff]
      %v1173 = vld [vmem:[%s1166 + $0x30] sm:$0xff]
      %v1174 = vld [vmem:[%s1166 + $0x38] sm:$0xff]
      %v1175 = vld [vmem:[%s1166 + $0x40] sm:$0xff]
      %v1176 = vld [vmem:[%s1166 + $0x48] sm:$0xff]
      %v1177 = vld [vmem:[%s1166 + $0x50] sm:$0xff]
      %v1178 = vld [vmem:[%s1166 + $0x58] sm:$0xff]
      %v1179 = vld [vmem:[%s1166 + $0x60] sm:$0xff]
      %v1180 = vld [vmem:[%s1166 + $0x68] sm:$0xff]
      %v1181 = vld [vmem:[%s1166 + $0x70] sm:$0xff]
      %v1182 = vld [vmem:[%s1166 + $0x78] sm:$0xff]
      %s1183 = scalar_lea.vmem %s1, 1600
      %v1184 = vld [vmem:[%s1183] sm:$0xff]
      %v1185 = vld [vmem:[%s1183 + $0x8] sm:$0xff]
      %v1186 = vld [vmem:[%s1183 + $0x10] sm:$0xff]
      %v1187 = vld [vmem:[%s1183 + $0x18] sm:$0xff]
      %v1188 = vld [vmem:[%s1183 + $0x20] sm:$0xff]
      %v1189 = vld [vmem:[%s1183 + $0x28] sm:$0xff]
      %v1190 = vld [vmem:[%s1183 + $0x30] sm:$0xff]
      %v1191 = vld [vmem:[%s1183 + $0x38] sm:$0xff]
      %v1192 = vld [vmem:[%s1183 + $0x40] sm:$0xff]
      %v1193 = vld [vmem:[%s1183 + $0x48] sm:$0xff]
      %v1194 = vld [vmem:[%s1183 + $0x50] sm:$0xff]
      %v1195 = vld [vmem:[%s1183 + $0x58] sm:$0xff]
      %v1196 = vld [vmem:[%s1183 + $0x60] sm:$0xff]
      %v1197 = vld [vmem:[%s1183 + $0x68] sm:$0xff]
      %v1198 = vld [vmem:[%s1183 + $0x70] sm:$0xff]
      %v1199 = vld [vmem:[%s1183 + $0x78] sm:$0xff]
      %v1200 = vld [vmem:[%s1183 + $0x80] sm:$0xff]
      %v1201 = vld [vmem:[%s1183 + $0x88] sm:$0xff]
      %v1202 = vld [vmem:[%s1183 + $0x90] sm:$0xff]
      %v1203 = vld [vmem:[%s1183 + $0x98] sm:$0xff]
      %v1204 = vld [vmem:[%s1183 + $0xa0] sm:$0xff]
      %v1205 = vld [vmem:[%s1183 + $0xa8] sm:$0xff]
      %v1206 = vld [vmem:[%s1183 + $0xb0] sm:$0xff]
      %v1207 = vld [vmem:[%s1183 + $0xb8] sm:$0xff]
      %v1208 = vld [vmem:[%s1183 + $0xc0] sm:$0xff]
      %v1209 = vld [vmem:[%s1183 + $0xc8] sm:$0xff]
      %v1210 = vld [vmem:[%s1183 + $0xd0] sm:$0xff]
      %v1211 = vld [vmem:[%s1183 + $0xd8] sm:$0xff]
      %v1212 = vld [vmem:[%s1183 + $0xe0] sm:$0xff]
      %v1213 = vld [vmem:[%s1183 + $0xe8] sm:$0xff]
      %v1214 = vld [vmem:[%s1183 + $0xf0] sm:$0xff]
      %v1215 = vld [vmem:[%s1183 + $0xf8] sm:$0xff]
      %v1216 = vld [vmem:[%s1183 + $0x100] sm:$0xff]
      %v1217 = vld [vmem:[%s1183 + $0x108] sm:$0xff]
      %v1218 = vld [vmem:[%s1183 + $0x110] sm:$0xff]
      %v1219 = vld [vmem:[%s1183 + $0x118] sm:$0xff]
      %v1220 = vld [vmem:[%s1183 + $0x120] sm:$0xff]
      %v1221 = vld [vmem:[%s1183 + $0x128] sm:$0xff]
      %v1222 = vld [vmem:[%s1183 + $0x130] sm:$0xff]
      %v1223 = vld [vmem:[%s1183 + $0x138] sm:$0xff]
      %v1225 = vsel %vm258, %v1168, 0
      %v1228 = vsel %vm258, %v1170, 0
      %v1231 = vsel %vm258, %v1172, 0
      %v1234 = vsel %vm258, %v1174, 0
      %v1237 = vsel %vm258, %v1176, 0
      %v1240 = vsel %vm258, %v1178, 0
      %v1243 = vsel %vm258, %v1180, 0
      %v1246 = vsel %vm258, %v1182, 0
      %1248 = vmatprep.subr.mxu0 %v1185
      %1249 = vmatpush1.msra.mxu0 %v1184
      %1250 = vmatprep.subr.mxu0 %v1187
      %1251 = vmatpush1.msra.mxu0 %v1186
      %1252 = vmatprep.subr.mxu0 %v1189
      %1253 = vmatpush1.msra.mxu0 %v1188
      %1254 = vmatprep.subr.mxu0 %v1191
      %1255 = vmatpush1.msra.mxu0 %v1190
      %1256 = vmatprep.subr.mxu0 %v1193
      %1257 = vmatpush1.msra.mxu0 %v1192
      %1258 = vmatprep.subr.mxu0 %v1195
      %1259 = vmatpush1.msra.mxu0 %v1194
      %1260 = vmatprep.subr.mxu0 %v1197
      %1261 = vmatpush1.msra.mxu0 %v1196
      %1262 = vmatprep.subr.mxu0 %v1199
      %1263 = vmatpush1.msra.mxu0 %v1198
      %1264 = vmatprep.subr.mxu0 %v1201
      %1265 = vmatpush1.msra.mxu0 %v1200
      %1266 = vmatprep.subr.mxu0 %v1203
      %1267 = vmatpush1.msra.mxu0 %v1202
      %1268 = vmatprep.subr.mxu0 %v1205
      %1269 = vmatpush1.msra.mxu0 %v1204
      %1270 = vmatprep.subr.mxu0 %v1207
      %1271 = vmatpush1.msra.mxu0 %v1206
      %1272 = vmatprep.subr.mxu0 %v1209
      %1273 = vmatpush1.msra.mxu0 %v1208
      %1274 = vmatprep.subr.mxu0 %v1211
      %1275 = vmatpush1.msra.mxu0 %v1210
      %1276 = vmatprep.subr.mxu0 %v1213
      %1277 = vmatpush1.msra.mxu0 %v1212
      %1278 = vmatprep.subr.mxu0 %v1215
      %1279 = vmatpush1.msra.mxu0 %v1214
      %1280 = vmatprep.subr.mxu0 %v1217
      %1281 = vmatpush1.msra.mxu0 %v1216
      %1282 = vmatprep.subr.mxu0 %v1219
      %1283 = vmatpush1.msra.mxu0 %v1218
      %1284 = vmatprep.subr.mxu0 %v1221
      %1285 = vmatpush1.msra.mxu0 %v1220
      %1286 = vmatprep.subr.mxu0 %v1223
      %1287 = vmatpush1.msra.mxu0 %v1222
      %1288 = vmatprep.subr.mxu0 0.0
      %1289 = vmatpush1.msra.mxu0 0.0
      %1290 = vmatprep.subr.mxu0 0.0
      %1291 = vmatpush1.msra.mxu0 0.0
      %1292 = vmatprep.subr.mxu0 0.0
      %1293 = vmatpush1.msra.mxu0 0.0
      %1294 = vmatprep.subr.mxu0 0.0
      %1295 = vmatpush1.msra.mxu0 0.0
      %1296 = vmatprep.subr.mxu0 0.0
      %1297 = vmatpush1.msra.mxu0 0.0
      %1298 = vmatprep.subr.mxu0 0.0
      %1299 = vmatpush1.msra.mxu0 0.0
      %1300 = vmatprep.subr.mxu0 0.0
      %1301 = vmatpush1.msra.mxu0 0.0
      %1302 = vmatprep.subr.mxu0 0.0
      %1303 = vmatpush1.msra.mxu0 0.0
      %1304 = vmatprep.subr.mxu0 0.0
      %1305 = vmatpush1.msra.mxu0 0.0
      %1306 = vmatprep.subr.mxu0 0.0
      %1307 = vmatpush1.msra.mxu0 0.0
      %1308 = vmatprep.subr.mxu0 0.0
      %1309 = vmatpush1.msra.mxu0 0.0
      %1310 = vmatprep.subr.mxu0 0.0
      %1311 = vmatpush1.msra.mxu0 0.0
      %1312 = vmatprep.mubr.f32.mxu0 %v1225
      %1313 = vmatmul.mubr.f32.gmra.mrb[0].mxu0 %v1167
      %v1314 = vpop.f32.mrb[0].mxu0
      %v1315 = vadd.f32 0.0, %v1314
      %v1316 = vpop.f32.mrb[0].mxu0
      %v1317 = vadd.f32 0.0, %v1316
      %1318 = vmatprep.mubr.f32.mxu0 %v1228
      %1319 = vmatmul.mubr.f32.gmra.mrb[0].mxu0 %v1169
      %v1320 = vpop.f32.mrb[0].mxu0
      %v1321 = vadd.f32 0.0, %v1320
      %v1322 = vpop.f32.mrb[0].mxu0
      %v1323 = vadd.f32 0.0, %v1322
      %1324 = vmatprep.mubr.f32.mxu0 %v1231
      %1325 = vmatmul.mubr.f32.gmra.mrb[0].mxu0 %v1171
      %v1326 = vpop.f32.mrb[0].mxu0
      %v1327 = vadd.f32 0.0, %v1326
      %v1328 = vpop.f32.mrb[0].mxu0
      %v1329 = vadd.f32 0.0, %v1328
      %1330 = vmatprep.mubr.f32.mxu0 %v1234
      %1331 = vmatmul.mubr.f32.gmra.mrb[0].mxu0 %v1173
      %v1332 = vpop.f32.mrb[0].mxu0
      %v1333 = vadd.f32 0.0, %v1332
      %v1334 = vpop.f32.mrb[0].mxu0
      %v1335 = vadd.f32 0.0, %v1334
      %1336 = vmatprep.mubr.f32.mxu0 %v1237
      %1337 = vmatmul.mubr.f32.gmra.mrb[0].mxu0 %v1175
      %v1338 = vpop.f32.mrb[0].mxu0
      %v1339 = vadd.f32 0.0, %v1338
      %v1340 = vpop.f32.mrb[0].mxu0
      %v1341 = vadd.f32 0.0, %v1340
      %1342 = vmatprep.mubr.f32.mxu0 %v1240
      %1343 = vmatmul.mubr.f32.gmra.mrb[0].mxu0 %v1177
      %v1344 = vpop.f32.mrb[0].mxu0
      %v1345 = vadd.f32 0.0, %v1344
      %v1346 = vpop.f32.mrb[0].mxu0
      %v1347 = vadd.f32 0.0, %v1346
      %1348 = vmatprep.mubr.f32.mxu0 %v1243
      %1349 = vmatmul.mubr.f32.gmra.mrb[0].mxu0 %v1179
      %v1350 = vpop.f32.mrb[0].mxu0
      %v1351 = vadd.f32 0.0, %v1350
      %v1352 = vpop.f32.mrb[0].mxu0
      %v1353 = vadd.f32 0.0, %v1352
      %1354 = vmatprep.mubr.f32.mxu0 %v1246
      %1355 = vmatmul.mubr.f32.gmra.mrb[0].mxu0 %v1181
      %v1356 = vpop.f32.mrb[0].mxu0
      %v1357 = vadd.f32 0.0, %v1356
      %v1358 = vpop.f32.mrb[0].mxu0
      %v1359 = vadd.f32 0.0, %v1358
      %1360 = vdwg.mxu0
      %v1361 = vadd.f32 %v1150, %v1315
      %v1362 = vadd.f32 %v1151, %v1317
      %v1363 = vadd.f32 %v1152, %v1321
      %v1364 = vadd.f32 %v1153, %v1323
      %v1365 = vadd.f32 %v1154, %v1327
      %v1366 = vadd.f32 %v1155, %v1329
      %v1367 = vadd.f32 %v1156, %v1333
      %v1368 = vadd.f32 %v1157, %v1335
      %v1369 = vadd.f32 %v1158, %v1339
      %v1370 = vadd.f32 %v1159, %v1341
      %v1371 = vadd.f32 %v1160, %v1345
      %v1372 = vadd.f32 %v1161, %v1347
      %v1373 = vadd.f32 %v1162, %v1351
      %v1374 = vadd.f32 %v1163, %v1353
      %v1375 = vadd.f32 %v1164, %v1357
      %v1376 = vadd.f32 %v1165, %v1359
      %s1377 = scalar_lea.vmem %s138, 32
      %v1378 = vld [vmem:[%s1377] sm:$0xff]
      %v1379 = vld [vmem:[%s1377 + $0x8] sm:$0xff]
      %v1380 = vld [vmem:[%s1377 + $0x10] sm:$0xff]
      %v1381 = vld [vmem:[%s1377 + $0x18] sm:$0xff]
      %v1382 = vld [vmem:[%s1377 + $0x20] sm:$0xff]
      %v1383 = vld [vmem:[%s1377 + $0x28] sm:$0xff]
      %v1384 = vld [vmem:[%s1377 + $0x30] sm:$0xff]
      %v1385 = vld [vmem:[%s1377 + $0x38] sm:$0xff]
      %v1386 = vld [vmem:[%s1377 + $0x40] sm:$0xff]
      %v1387 = vld [vmem:[%s1377 + $0x48] sm:$0xff]
      %v1388 = vld [vmem:[%s1377 + $0x50] sm:$0xff]
      %v1389 = vld [vmem:[%s1377 + $0x58] sm:$0xff]
      %v1390 = vld [vmem:[%s1377 + $0x60] sm:$0xff]
      %v1391 = vld [vmem:[%s1377 + $0x68] sm:$0xff]
      %v1392 = vld [vmem:[%s1377 + $0x70] sm:$0xff]
      %v1393 = vld [vmem:[%s1377 + $0x78] sm:$0xff]
      %s1394 = scalar_lea.vmem %s1, 1920
      %v1395 = vld [vmem:[%s1394] sm:$0xff]
      %v1396 = vld [vmem:[%s1394 + $0x8] sm:$0xff]
      %v1397 = vld [vmem:[%s1394 + $0x10] sm:$0xff]
      %v1398 = vld [vmem:[%s1394 + $0x18] sm:$0xff]
      %v1399 = vld [vmem:[%s1394 + $0x20] sm:$0xff]
      %v1400 = vld [vmem:[%s1394 + $0x28] sm:$0xff]
      %v1401 = vld [vmem:[%s1394 + $0x30] sm:$0xff]
      %v1402 = vld [vmem:[%s1394 + $0x38] sm:$0xff]
      %v1403 = vld [vmem:[%s1394 + $0x40] sm:$0xff]
      %v1404 = vld [vmem:[%s1394 + $0x48] sm:$0xff]
      %v1405 = vld [vmem:[%s1394 + $0x50] sm:$0xff]
      %v1406 = vld [vmem:[%s1394 + $0x58] sm:$0xff]
      %v1407 = vld [vmem:[%s1394 + $0x60] sm:$0xff]
      %v1408 = vld [vmem:[%s1394 + $0x68] sm:$0xff]
      %v1409 = vld [vmem:[%s1394 + $0x70] sm:$0xff]
      %v1410 = vld [vmem:[%s1394 + $0x78] sm:$0xff]
      %v1411 = vld [vmem:[%s1394 + $0x80] sm:$0xff]
      %v1412 = vld [vmem:[%s1394 + $0x88] sm:$0xff]
      %v1413 = vld [vmem:[%s1394 + $0x90] sm:$0xff]
      %v1414 = vld [vmem:[%s1394 + $0x98] sm:$0xff]
      %v1415 = vld [vmem:[%s1394 + $0xa0] sm:$0xff]
      %v1416 = vld [vmem:[%s1394 + $0xa8] sm:$0xff]
      %v1417 = vld [vmem:[%s1394 + $0xb0] sm:$0xff]
      %v1418 = vld [vmem:[%s1394 + $0xb8] sm:$0xff]
      %v1419 = vld [vmem:[%s1394 + $0xc0] sm:$0xff]
      %v1420 = vld [vmem:[%s1394 + $0xc8] sm:$0xff]
      %v1421 = vld [vmem:[%s1394 + $0xd0] sm:$0xff]
      %v1422 = vld [vmem:[%s1394 + $0xd8] sm:$0xff]
      %v1423 = vld [vmem:[%s1394 + $0xe0] sm:$0xff]
      %v1424 = vld [vmem:[%s1394 + $0xe8] sm:$0xff]
      %v1425 = vld [vmem:[%s1394 + $0xf0] sm:$0xff]
      %v1426 = vld [vmem:[%s1394 + $0xf8] sm:$0xff]
      %v1427 = vld [vmem:[%s1394 + $0x100] sm:$0xff]
      %v1428 = vld [vmem:[%s1394 + $0x108] sm:$0xff]
      %v1429 = vld [vmem:[%s1394 + $0x110] sm:$0xff]
      %v1430 = vld [vmem:[%s1394 + $0x118] sm:$0xff]
      %v1431 = vld [vmem:[%s1394 + $0x120] sm:$0xff]
      %v1432 = vld [vmem:[%s1394 + $0x128] sm:$0xff]
      %v1433 = vld [vmem:[%s1394 + $0x130] sm:$0xff]
      %v1434 = vld [vmem:[%s1394 + $0x138] sm:$0xff]
      %v1436 = vsel %vm258, %v1379, 0
      %v1439 = vsel %vm258, %v1381, 0
      %v1442 = vsel %vm258, %v1383, 0
      %v1445 = vsel %vm258, %v1385, 0
      %v1448 = vsel %vm258, %v1387, 0
      %v1451 = vsel %vm258, %v1389, 0
      %v1454 = vsel %vm258, %v1391, 0
      %v1457 = vsel %vm258, %v1393, 0
      %1459 = vmatprep.subr.mxu0 %v1396
      %1460 = vmatpush1.msra.mxu0 %v1395
      %1461 = vmatprep.subr.mxu0 %v1398
      %1462 = vmatpush1.msra.mxu0 %v1397
      %1463 = vmatprep.subr.mxu0 %v1400
      %1464 = vmatpush1.msra.mxu0 %v1399
      %1465 = vmatprep.subr.mxu0 %v1402
      %1466 = vmatpush1.msra.mxu0 %v1401
      %1467 = vmatprep.subr.mxu0 %v1404
      %1468 = vmatpush1.msra.mxu0 %v1403
      %1469 = vmatprep.subr.mxu0 %v1406
      %1470 = vmatpush1.msra.mxu0 %v1405
      %1471 = vmatprep.subr.mxu0 %v1408
      %1472 = vmatpush1.msra.mxu0 %v1407
      %1473 = vmatprep.subr.mxu0 %v1410
      %1474 = vmatpush1.msra.mxu0 %v1409
      %1475 = vmatprep.subr.mxu0 %v1412
      %1476 = vmatpush1.msra.mxu0 %v1411
      %1477 = vmatprep.subr.mxu0 %v1414
      %1478 = vmatpush1.msra.mxu0 %v1413
      %1479 = vmatprep.subr.mxu0 %v1416
      %1480 = vmatpush1.msra.mxu0 %v1415
      %1481 = vmatprep.subr.mxu0 %v1418
      %1482 = vmatpush1.msra.mxu0 %v1417
      %1483 = vmatprep.subr.mxu0 %v1420
      %1484 = vmatpush1.msra.mxu0 %v1419
      %1485 = vmatprep.subr.mxu0 %v1422
      %1486 = vmatpush1.msra.mxu0 %v1421
      %1487 = vmatprep.subr.mxu0 %v1424
      %1488 = vmatpush1.msra.mxu0 %v1423
      %1489 = vmatprep.subr.mxu0 %v1426
      %1490 = vmatpush1.msra.mxu0 %v1425
      %1491 = vmatprep.subr.mxu0 %v1428
      %1492 = vmatpush1.msra.mxu0 %v1427
      %1493 = vmatprep.subr.mxu0 %v1430
      %1494 = vmatpush1.msra.mxu0 %v1429
      %1495 = vmatprep.subr.mxu0 %v1432
      %1496 = vmatpush1.msra.mxu0 %v1431
      %1497 = vmatprep.subr.mxu0 %v1434
      %1498 = vmatpush1.msra.mxu0 %v1433
      %1499 = vmatprep.subr.mxu0 0.0
      %1500 = vmatpush1.msra.mxu0 0.0
      %1501 = vmatprep.subr.mxu0 0.0
      %1502 = vmatpush1.msra.mxu0 0.0
      %1503 = vmatprep.subr.mxu0 0.0
      %1504 = vmatpush1.msra.mxu0 0.0
      %1505 = vmatprep.subr.mxu0 0.0
      %1506 = vmatpush1.msra.mxu0 0.0
      %1507 = vmatprep.subr.mxu0 0.0
      %1508 = vmatpush1.msra.mxu0 0.0
      %1509 = vmatprep.subr.mxu0 0.0
      %1510 = vmatpush1.msra.mxu0 0.0
      %1511 = vmatprep.subr.mxu0 0.0
      %1512 = vmatpush1.msra.mxu0 0.0
      %1513 = vmatprep.subr.mxu0 0.0
      %1514 = vmatpush1.msra.mxu0 0.0
      %1515 = vmatprep.subr.mxu0 0.0
      %1516 = vmatpush1.msra.mxu0 0.0
      %1517 = vmatprep.subr.mxu0 0.0
      %1518 = vmatpush1.msra.mxu0 0.0
      %1519 = vmatprep.subr.mxu0 0.0
      %1520 = vmatpush1.msra.mxu0 0.0
      %1521 = vmatprep.subr.mxu0 0.0
      %1522 = vmatpush1.msra.mxu0 0.0
      %1523 = vmatprep.mubr.f32.mxu0 %v1436
      %1524 = vmatmul.mubr.f32.gmra.mrb[0].mxu0 %v1378
      %v1525 = vpop.f32.mrb[0].mxu0
      %v1526 = vadd.f32 0.0, %v1525
      %v1527 = vpop.f32.mrb[0].mxu0
      %v1528 = vadd.f32 0.0, %v1527
      %1529 = vmatprep.mubr.f32.mxu0 %v1439
      %1530 = vmatmul.mubr.f32.gmra.mrb[0].mxu0 %v1380
      %v1531 = vpop.f32.mrb[0].mxu0
      %v1532 = vadd.f32 0.0, %v1531
      %v1533 = vpop.f32.mrb[0].mxu0
      %v1534 = vadd.f32 0.0, %v1533
      %1535 = vmatprep.mubr.f32.mxu0 %v1442
      %1536 = vmatmul.mubr.f32.gmra.mrb[0].mxu0 %v1382
      %v1537 = vpop.f32.mrb[0].mxu0
      %v1538 = vadd.f32 0.0, %v1537
      %v1539 = vpop.f32.mrb[0].mxu0
      %v1540 = vadd.f32 0.0, %v1539
      %1541 = vmatprep.mubr.f32.mxu0 %v1445
      %1542 = vmatmul.mubr.f32.gmra.mrb[0].mxu0 %v1384
      %v1543 = vpop.f32.mrb[0].mxu0
      %v1544 = vadd.f32 0.0, %v1543
      %v1545 = vpop.f32.mrb[0].mxu0
      %v1546 = vadd.f32 0.0, %v1545
      %1547 = vmatprep.mubr.f32.mxu0 %v1448
      %1548 = vmatmul.mubr.f32.gmra.mrb[0].mxu0 %v1386
      %v1549 = vpop.f32.mrb[0].mxu0
      %v1550 = vadd.f32 0.0, %v1549
      %v1551 = vpop.f32.mrb[0].mxu0
      %v1552 = vadd.f32 0.0, %v1551
      %1553 = vmatprep.mubr.f32.mxu0 %v1451
      %1554 = vmatmul.mubr.f32.gmra.mrb[0].mxu0 %v1388
      %v1555 = vpop.f32.mrb[0].mxu0
      %v1556 = vadd.f32 0.0, %v1555
      %v1557 = vpop.f32.mrb[0].mxu0
      %v1558 = vadd.f32 0.0, %v1557
      %1559 = vmatprep.mubr.f32.mxu0 %v1454
      %1560 = vmatmul.mubr.f32.gmra.mrb[0].mxu0 %v1390
      %v1561 = vpop.f32.mrb[0].mxu0
      %v1562 = vadd.f32 0.0, %v1561
      %v1563 = vpop.f32.mrb[0].mxu0
      %v1564 = vadd.f32 0.0, %v1563
      %1565 = vmatprep.mubr.f32.mxu0 %v1457
      %1566 = vmatmul.mubr.f32.gmra.mrb[0].mxu0 %v1392
      %v1567 = vpop.f32.mrb[0].mxu0
      %v1568 = vadd.f32 0.0, %v1567
      %v1569 = vpop.f32.mrb[0].mxu0
      %v1570 = vadd.f32 0.0, %v1569
      %1571 = vdwg.mxu0
      %v1572 = vadd.f32 %v1361, %v1526
      %v1573 = vadd.f32 %v1362, %v1528
      %v1574 = vadd.f32 %v1363, %v1532
      %v1575 = vadd.f32 %v1364, %v1534
      %v1576 = vadd.f32 %v1365, %v1538
      %v1577 = vadd.f32 %v1366, %v1540
      %v1578 = vadd.f32 %v1367, %v1544
      %v1579 = vadd.f32 %v1368, %v1546
      %v1580 = vadd.f32 %v1369, %v1550
      %v1581 = vadd.f32 %v1370, %v1552
      %v1582 = vadd.f32 %v1371, %v1556
      %v1583 = vadd.f32 %v1372, %v1558
      %v1584 = vadd.f32 %v1373, %v1562
      %v1585 = vadd.f32 %v1374, %v1564
      %v1586 = vadd.f32 %v1375, %v1568
      %v1587 = vadd.f32 %v1376, %v1570
      %s1588 = scalar_lea.vmem %s138, 192
      %v1589 = vld [vmem:[%s1588] sm:$0xff]
      %v1590 = vld [vmem:[%s1588 + $0x8] sm:$0xff]
      %v1591 = vld [vmem:[%s1588 + $0x10] sm:$0xff]
      %v1592 = vld [vmem:[%s1588 + $0x18] sm:$0xff]
      %v1593 = vld [vmem:[%s1588 + $0x20] sm:$0xff]
      %v1594 = vld [vmem:[%s1588 + $0x28] sm:$0xff]
      %v1595 = vld [vmem:[%s1588 + $0x30] sm:$0xff]
      %v1596 = vld [vmem:[%s1588 + $0x38] sm:$0xff]
      %v1597 = vld [vmem:[%s1588 + $0x40] sm:$0xff]
      %v1598 = vld [vmem:[%s1588 + $0x48] sm:$0xff]
      %v1599 = vld [vmem:[%s1588 + $0x50] sm:$0xff]
      %v1600 = vld [vmem:[%s1588 + $0x58] sm:$0xff]
      %v1601 = vld [vmem:[%s1588 + $0x60] sm:$0xff]
      %v1602 = vld [vmem:[%s1588 + $0x68] sm:$0xff]
      %v1603 = vld [vmem:[%s1588 + $0x70] sm:$0xff]
      %v1604 = vld [vmem:[%s1588 + $0x78] sm:$0xff]
      %s1605 = scalar_lea.vmem %s1, 2240
      %v1606 = vld [vmem:[%s1605] sm:$0xff]
      %v1607 = vld [vmem:[%s1605 + $0x8] sm:$0xff]
      %v1608 = vld [vmem:[%s1605 + $0x10] sm:$0xff]
      %v1609 = vld [vmem:[%s1605 + $0x18] sm:$0xff]
      %v1610 = vld [vmem:[%s1605 + $0x20] sm:$0xff]
      %v1611 = vld [vmem:[%s1605 + $0x28] sm:$0xff]
      %v1612 = vld [vmem:[%s1605 + $0x30] sm:$0xff]
      %v1613 = vld [vmem:[%s1605 + $0x38] sm:$0xff]
      %v1614 = vld [vmem:[%s1605 + $0x40] sm:$0xff]
      %v1615 = vld [vmem:[%s1605 + $0x48] sm:$0xff]
      %v1616 = vld [vmem:[%s1605 + $0x50] sm:$0xff]
      %v1617 = vld [vmem:[%s1605 + $0x58] sm:$0xff]
      %v1618 = vld [vmem:[%s1605 + $0x60] sm:$0xff]
      %v1619 = vld [vmem:[%s1605 + $0x68] sm:$0xff]
      %v1620 = vld [vmem:[%s1605 + $0x70] sm:$0xff]
      %v1621 = vld [vmem:[%s1605 + $0x78] sm:$0xff]
      %v1622 = vld [vmem:[%s1605 + $0x80] sm:$0xff]
      %v1623 = vld [vmem:[%s1605 + $0x88] sm:$0xff]
      %v1624 = vld [vmem:[%s1605 + $0x90] sm:$0xff]
      %v1625 = vld [vmem:[%s1605 + $0x98] sm:$0xff]
      %v1626 = vld [vmem:[%s1605 + $0xa0] sm:$0xff]
      %v1627 = vld [vmem:[%s1605 + $0xa8] sm:$0xff]
      %v1628 = vld [vmem:[%s1605 + $0xb0] sm:$0xff]
      %v1629 = vld [vmem:[%s1605 + $0xb8] sm:$0xff]
      %v1630 = vld [vmem:[%s1605 + $0xc0] sm:$0xff]
      %v1631 = vld [vmem:[%s1605 + $0xc8] sm:$0xff]
      %v1632 = vld [vmem:[%s1605 + $0xd0] sm:$0xff]
      %v1633 = vld [vmem:[%s1605 + $0xd8] sm:$0xff]
      %v1634 = vld [vmem:[%s1605 + $0xe0] sm:$0xff]
      %v1635 = vld [vmem:[%s1605 + $0xe8] sm:$0xff]
      %v1636 = vld [vmem:[%s1605 + $0xf0] sm:$0xff]
      %v1637 = vld [vmem:[%s1605 + $0xf8] sm:$0xff]
      %v1638 = vld [vmem:[%s1605 + $0x100] sm:$0xff]
      %v1639 = vld [vmem:[%s1605 + $0x108] sm:$0xff]
      %v1640 = vld [vmem:[%s1605 + $0x110] sm:$0xff]
      %v1641 = vld [vmem:[%s1605 + $0x118] sm:$0xff]
      %v1642 = vld [vmem:[%s1605 + $0x120] sm:$0xff]
      %v1643 = vld [vmem:[%s1605 + $0x128] sm:$0xff]
      %v1644 = vld [vmem:[%s1605 + $0x130] sm:$0xff]
      %v1645 = vld [vmem:[%s1605 + $0x138] sm:$0xff]
      %v1647 = vsel %vm258, %v1590, 0
      %v1650 = vsel %vm258, %v1592, 0
      %v1653 = vsel %vm258, %v1594, 0
      %v1656 = vsel %vm258, %v1596, 0
      %v1659 = vsel %vm258, %v1598, 0
      %v1662 = vsel %vm258, %v1600, 0
      %v1665 = vsel %vm258, %v1602, 0
      %v1668 = vsel %vm258, %v1604, 0
      %1670 = vmatprep.subr.mxu0 %v1607
      %1671 = vmatpush1.msra.mxu0 %v1606
      %1672 = vmatprep.subr.mxu0 %v1609
      %1673 = vmatpush1.msra.mxu0 %v1608
      %1674 = vmatprep.subr.mxu0 %v1611
      %1675 = vmatpush1.msra.mxu0 %v1610
      %1676 = vmatprep.subr.mxu0 %v1613
      %1677 = vmatpush1.msra.mxu0 %v1612
      %1678 = vmatprep.subr.mxu0 %v1615
      %1679 = vmatpush1.msra.mxu0 %v1614
      %1680 = vmatprep.subr.mxu0 %v1617
      %1681 = vmatpush1.msra.mxu0 %v1616
      %1682 = vmatprep.subr.mxu0 %v1619
      %1683 = vmatpush1.msra.mxu0 %v1618
      %1684 = vmatprep.subr.mxu0 %v1621
      %1685 = vmatpush1.msra.mxu0 %v1620
      %1686 = vmatprep.subr.mxu0 %v1623
      %1687 = vmatpush1.msra.mxu0 %v1622
      %1688 = vmatprep.subr.mxu0 %v1625
      %1689 = vmatpush1.msra.mxu0 %v1624
      %1690 = vmatprep.subr.mxu0 %v1627
      %1691 = vmatpush1.msra.mxu0 %v1626
      %1692 = vmatprep.subr.mxu0 %v1629
      %1693 = vmatpush1.msra.mxu0 %v1628
      %1694 = vmatprep.subr.mxu0 %v1631
      %1695 = vmatpush1.msra.mxu0 %v1630
      %1696 = vmatprep.subr.mxu0 %v1633
      %1697 = vmatpush1.msra.mxu0 %v1632
      %1698 = vmatprep.subr.mxu0 %v1635
      %1699 = vmatpush1.msra.mxu0 %v1634
      %1700 = vmatprep.subr.mxu0 %v1637
      %1701 = vmatpush1.msra.mxu0 %v1636
      %1702 = vmatprep.subr.mxu0 %v1639
      %1703 = vmatpush1.msra.mxu0 %v1638
      %1704 = vmatprep.subr.mxu0 %v1641
      %1705 = vmatpush1.msra.mxu0 %v1640
      %1706 = vmatprep.subr.mxu0 %v1643
      %1707 = vmatpush1.msra.mxu0 %v1642
      %1708 = vmatprep.subr.mxu0 %v1645
      %1709 = vmatpush1.msra.mxu0 %v1644
      %1710 = vmatprep.subr.mxu0 0.0
      %1711 = vmatpush1.msra.mxu0 0.0
      %1712 = vmatprep.subr.mxu0 0.0
      %1713 = vmatpush1.msra.mxu0 0.0
      %1714 = vmatprep.subr.mxu0 0.0
      %1715 = vmatpush1.msra.mxu0 0.0
      %1716 = vmatprep.subr.mxu0 0.0
      %1717 = vmatpush1.msra.mxu0 0.0
      %1718 = vmatprep.subr.mxu0 0.0
      %1719 = vmatpush1.msra.mxu0 0.0
      %1720 = vmatprep.subr.mxu0 0.0
      %1721 = vmatpush1.msra.mxu0 0.0
      %1722 = vmatprep.subr.mxu0 0.0
      %1723 = vmatpush1.msra.mxu0 0.0
      %1724 = vmatprep.subr.mxu0 0.0
      %1725 = vmatpush1.msra.mxu0 0.0
      %1726 = vmatprep.subr.mxu0 0.0
      %1727 = vmatpush1.msra.mxu0 0.0
      %1728 = vmatprep.subr.mxu0 0.0
      %1729 = vmatpush1.msra.mxu0 0.0
      %1730 = vmatprep.subr.mxu0 0.0
      %1731 = vmatpush1.msra.mxu0 0.0
      %1732 = vmatprep.subr.mxu0 0.0
      %1733 = vmatpush1.msra.mxu0 0.0
      %1734 = vmatprep.mubr.f32.mxu0 %v1647
      %1735 = vmatmul.mubr.f32.gmra.mrb[0].mxu0 %v1589
      %v1736 = vpop.f32.mrb[0].mxu0
      %v1737 = vadd.f32 0.0, %v1736
      %v1738 = vpop.f32.mrb[0].mxu0
      %v1739 = vadd.f32 0.0, %v1738
      %1740 = vmatprep.mubr.f32.mxu0 %v1650
      %1741 = vmatmul.mubr.f32.gmra.mrb[0].mxu0 %v1591
      %v1742 = vpop.f32.mrb[0].mxu0
      %v1743 = vadd.f32 0.0, %v1742
      %v1744 = vpop.f32.mrb[0].mxu0
      %v1745 = vadd.f32 0.0, %v1744
      %1746 = vmatprep.mubr.f32.mxu0 %v1653
      %1747 = vmatmul.mubr.f32.gmra.mrb[0].mxu0 %v1593
      %v1748 = vpop.f32.mrb[0].mxu0
      %v1749 = vadd.f32 0.0, %v1748
      %v1750 = vpop.f32.mrb[0].mxu0
      %v1751 = vadd.f32 0.0, %v1750
      %1752 = vmatprep.mubr.f32.mxu0 %v1656
      %1753 = vmatmul.mubr.f32.gmra.mrb[0].mxu0 %v1595
      %v1754 = vpop.f32.mrb[0].mxu0
      %v1755 = vadd.f32 0.0, %v1754
      %v1756 = vpop.f32.mrb[0].mxu0
      %v1757 = vadd.f32 0.0, %v1756
      %1758 = vmatprep.mubr.f32.mxu0 %v1659
      %1759 = vmatmul.mubr.f32.gmra.mrb[0].mxu0 %v1597
      %v1760 = vpop.f32.mrb[0].mxu0
      %v1761 = vadd.f32 0.0, %v1760
      %v1762 = vpop.f32.mrb[0].mxu0
      %v1763 = vadd.f32 0.0, %v1762
      %1764 = vmatprep.mubr.f32.mxu0 %v1662
      %1765 = vmatmul.mubr.f32.gmra.mrb[0].mxu0 %v1599
      %v1766 = vpop.f32.mrb[0].mxu0
      %v1767 = vadd.f32 0.0, %v1766
      %v1768 = vpop.f32.mrb[0].mxu0
      %v1769 = vadd.f32 0.0, %v1768
      %1770 = vmatprep.mubr.f32.mxu0 %v1665
      %1771 = vmatmul.mubr.f32.gmra.mrb[0].mxu0 %v1601
      %v1772 = vpop.f32.mrb[0].mxu0
      %v1773 = vadd.f32 0.0, %v1772
      %v1774 = vpop.f32.mrb[0].mxu0
      %v1775 = vadd.f32 0.0, %v1774
      %1776 = vmatprep.mubr.f32.mxu0 %v1668
      %1777 = vmatmul.mubr.f32.gmra.mrb[0].mxu0 %v1603
      %v1778 = vpop.f32.mrb[0].mxu0
      %v1779 = vadd.f32 0.0, %v1778
      %v1780 = vpop.f32.mrb[0].mxu0
      %v1781 = vadd.f32 0.0, %v1780
      %1782 = vdwg.mxu0
      %v1783 = vadd.f32 %v1572, %v1737
      %v1784 = vadd.f32 %v1573, %v1739
      %v1785 = vadd.f32 %v1574, %v1743
      %v1786 = vadd.f32 %v1575, %v1745
      %v1787 = vadd.f32 %v1576, %v1749
      %v1788 = vadd.f32 %v1577, %v1751
      %v1789 = vadd.f32 %v1578, %v1755
      %v1790 = vadd.f32 %v1579, %v1757
      %v1791 = vadd.f32 %v1580, %v1761
      %v1792 = vadd.f32 %v1581, %v1763
      %v1793 = vadd.f32 %v1582, %v1767
      %v1794 = vadd.f32 %v1583, %v1769
      %v1795 = vadd.f32 %v1584, %v1773
      %v1796 = vadd.f32 %v1585, %v1775
      %v1797 = vadd.f32 %v1586, %v1779
      %v1798 = vadd.f32 %v1587, %v1781
      %s1799 = scalar_lea.vmem %s138, 352
      %v1800 = vld [vmem:[%s1799] sm:$0xff]
      %v1801 = vld [vmem:[%s1799 + $0x8] sm:$0xff]
      %v1802 = vld [vmem:[%s1799 + $0x10] sm:$0xff]
      %v1803 = vld [vmem:[%s1799 + $0x18] sm:$0xff]
      %v1804 = vld [vmem:[%s1799 + $0x20] sm:$0xff]
      %v1805 = vld [vmem:[%s1799 + $0x28] sm:$0xff]
      %v1806 = vld [vmem:[%s1799 + $0x30] sm:$0xff]
      %v1807 = vld [vmem:[%s1799 + $0x38] sm:$0xff]
      %v1808 = vld [vmem:[%s1799 + $0x40] sm:$0xff]
      %v1809 = vld [vmem:[%s1799 + $0x48] sm:$0xff]
      %v1810 = vld [vmem:[%s1799 + $0x50] sm:$0xff]
      %v1811 = vld [vmem:[%s1799 + $0x58] sm:$0xff]
      %v1812 = vld [vmem:[%s1799 + $0x60] sm:$0xff]
      %v1813 = vld [vmem:[%s1799 + $0x68] sm:$0xff]
      %v1814 = vld [vmem:[%s1799 + $0x70] sm:$0xff]
      %v1815 = vld [vmem:[%s1799 + $0x78] sm:$0xff]
      %s1816 = scalar_lea.vmem %s1, 2560
      %v1817 = vld [vmem:[%s1816] sm:$0xff]
      %v1818 = vld [vmem:[%s1816 + $0x8] sm:$0xff]
      %v1819 = vld [vmem:[%s1816 + $0x10] sm:$0xff]
      %v1820 = vld [vmem:[%s1816 + $0x18] sm:$0xff]
      %v1821 = vld [vmem:[%s1816 + $0x20] sm:$0xff]
      %v1822 = vld [vmem:[%s1816 + $0x28] sm:$0xff]
      %v1823 = vld [vmem:[%s1816 + $0x30] sm:$0xff]
      %v1824 = vld [vmem:[%s1816 + $0x38] sm:$0xff]
      %v1825 = vld [vmem:[%s1816 + $0x40] sm:$0xff]
      %v1826 = vld [vmem:[%s1816 + $0x48] sm:$0xff]
      %v1827 = vld [vmem:[%s1816 + $0x50] sm:$0xff]
      %v1828 = vld [vmem:[%s1816 + $0x58] sm:$0xff]
      %v1829 = vld [vmem:[%s1816 + $0x60] sm:$0xff]
      %v1830 = vld [vmem:[%s1816 + $0x68] sm:$0xff]
      %v1831 = vld [vmem:[%s1816 + $0x70] sm:$0xff]
      %v1832 = vld [vmem:[%s1816 + $0x78] sm:$0xff]
      %v1833 = vld [vmem:[%s1816 + $0x80] sm:$0xff]
      %v1834 = vld [vmem:[%s1816 + $0x88] sm:$0xff]
      %v1835 = vld [vmem:[%s1816 + $0x90] sm:$0xff]
      %v1836 = vld [vmem:[%s1816 + $0x98] sm:$0xff]
      %v1837 = vld [vmem:[%s1816 + $0xa0] sm:$0xff]
      %v1838 = vld [vmem:[%s1816 + $0xa8] sm:$0xff]
      %v1839 = vld [vmem:[%s1816 + $0xb0] sm:$0xff]
      %v1840 = vld [vmem:[%s1816 + $0xb8] sm:$0xff]
      %v1841 = vld [vmem:[%s1816 + $0xc0] sm:$0xff]
      %v1842 = vld [vmem:[%s1816 + $0xc8] sm:$0xff]
      %v1843 = vld [vmem:[%s1816 + $0xd0] sm:$0xff]
      %v1844 = vld [vmem:[%s1816 + $0xd8] sm:$0xff]
      %v1845 = vld [vmem:[%s1816 + $0xe0] sm:$0xff]
      %v1846 = vld [vmem:[%s1816 + $0xe8] sm:$0xff]
      %v1847 = vld [vmem:[%s1816 + $0xf0] sm:$0xff]
      %v1848 = vld [vmem:[%s1816 + $0xf8] sm:$0xff]
      %v1849 = vld [vmem:[%s1816 + $0x100] sm:$0xff]
      %v1850 = vld [vmem:[%s1816 + $0x108] sm:$0xff]
      %v1851 = vld [vmem:[%s1816 + $0x110] sm:$0xff]
      %v1852 = vld [vmem:[%s1816 + $0x118] sm:$0xff]
      %v1853 = vld [vmem:[%s1816 + $0x120] sm:$0xff]
      %v1854 = vld [vmem:[%s1816 + $0x128] sm:$0xff]
      %v1855 = vld [vmem:[%s1816 + $0x130] sm:$0xff]
      %v1856 = vld [vmem:[%s1816 + $0x138] sm:$0xff]
      %v1858 = vsel %vm258, %v1801, 0
      %v1861 = vsel %vm258, %v1803, 0
      %v1864 = vsel %vm258, %v1805, 0
      %v1867 = vsel %vm258, %v1807, 0
      %v1870 = vsel %vm258, %v1809, 0
      %v1873 = vsel %vm258, %v1811, 0
      %v1876 = vsel %vm258, %v1813, 0
      %v1879 = vsel %vm258, %v1815, 0
      %1881 = vmatprep.subr.mxu0 %v1818
      %1882 = vmatpush1.msra.mxu0 %v1817
      %1883 = vmatprep.subr.mxu0 %v1820
      %1884 = vmatpush1.msra.mxu0 %v1819
      %1885 = vmatprep.subr.mxu0 %v1822
      %1886 = vmatpush1.msra.mxu0 %v1821
      %1887 = vmatprep.subr.mxu0 %v1824
      %1888 = vmatpush1.msra.mxu0 %v1823
      %1889 = vmatprep.subr.mxu0 %v1826
      %1890 = vmatpush1.msra.mxu0 %v1825
      %1891 = vmatprep.subr.mxu0 %v1828
      %1892 = vmatpush1.msra.mxu0 %v1827
      %1893 = vmatprep.subr.mxu0 %v1830
      %1894 = vmatpush1.msra.mxu0 %v1829
      %1895 = vmatprep.subr.mxu0 %v1832
      %1896 = vmatpush1.msra.mxu0 %v1831
      %1897 = vmatprep.subr.mxu0 %v1834
      %1898 = vmatpush1.msra.mxu0 %v1833
      %1899 = vmatprep.subr.mxu0 %v1836
      %1900 = vmatpush1.msra.mxu0 %v1835
      %1901 = vmatprep.subr.mxu0 %v1838
      %1902 = vmatpush1.msra.mxu0 %v1837
      %1903 = vmatprep.subr.mxu0 %v1840
      %1904 = vmatpush1.msra.mxu0 %v1839
      %1905 = vmatprep.subr.mxu0 %v1842
      %1906 = vmatpush1.msra.mxu0 %v1841
      %1907 = vmatprep.subr.mxu0 %v1844
      %1908 = vmatpush1.msra.mxu0 %v1843
      %1909 = vmatprep.subr.mxu0 %v1846
      %1910 = vmatpush1.msra.mxu0 %v1845
      %1911 = vmatprep.subr.mxu0 %v1848
      %1912 = vmatpush1.msra.mxu0 %v1847
      %1913 = vmatprep.subr.mxu0 %v1850
      %1914 = vmatpush1.msra.mxu0 %v1849
      %1915 = vmatprep.subr.mxu0 %v1852
      %1916 = vmatpush1.msra.mxu0 %v1851
      %1917 = vmatprep.subr.mxu0 %v1854
      %1918 = vmatpush1.msra.mxu0 %v1853
      %1919 = vmatprep.subr.mxu0 %v1856
      %1920 = vmatpush1.msra.mxu0 %v1855
      %1921 = vmatprep.subr.mxu0 0.0
      %1922 = vmatpush1.msra.mxu0 0.0
      %1923 = vmatprep.subr.mxu0 0.0
      %1924 = vmatpush1.msra.mxu0 0.0
      %1925 = vmatprep.subr.mxu0 0.0
      %1926 = vmatpush1.msra.mxu0 0.0
      %1927 = vmatprep.subr.mxu0 0.0
      %1928 = vmatpush1.msra.mxu0 0.0
      %1929 = vmatprep.subr.mxu0 0.0
      %1930 = vmatpush1.msra.mxu0 0.0
      %1931 = vmatprep.subr.mxu0 0.0
      %1932 = vmatpush1.msra.mxu0 0.0
      %1933 = vmatprep.subr.mxu0 0.0
      %1934 = vmatpush1.msra.mxu0 0.0
      %1935 = vmatprep.subr.mxu0 0.0
      %1936 = vmatpush1.msra.mxu0 0.0
      %1937 = vmatprep.subr.mxu0 0.0
      %1938 = vmatpush1.msra.mxu0 0.0
      %1939 = vmatprep.subr.mxu0 0.0
      %1940 = vmatpush1.msra.mxu0 0.0
      %1941 = vmatprep.subr.mxu0 0.0
      %1942 = vmatpush1.msra.mxu0 0.0
      %1943 = vmatprep.subr.mxu0 0.0
      %1944 = vmatpush1.msra.mxu0 0.0
      %1945 = vmatprep.mubr.f32.mxu0 %v1858
      %1946 = vmatmul.mubr.f32.gmra.mrb[0].mxu0 %v1800
      %v1947 = vpop.f32.mrb[0].mxu0
      %v1948 = vadd.f32 0.0, %v1947
      %v1949 = vpop.f32.mrb[0].mxu0
      %v1950 = vadd.f32 0.0, %v1949
      %1951 = vmatprep.mubr.f32.mxu0 %v1861
      %1952 = vmatmul.mubr.f32.gmra.mrb[0].mxu0 %v1802
      %v1953 = vpop.f32.mrb[0].mxu0
      %v1954 = vadd.f32 0.0, %v1953
      %v1955 = vpop.f32.mrb[0].mxu0
      %v1956 = vadd.f32 0.0, %v1955
      %1957 = vmatprep.mubr.f32.mxu0 %v1864
      %1958 = vmatmul.mubr.f32.gmra.mrb[0].mxu0 %v1804
      %v1959 = vpop.f32.mrb[0].mxu0
      %v1960 = vadd.f32 0.0, %v1959
      %v1961 = vpop.f32.mrb[0].mxu0
      %v1962 = vadd.f32 0.0, %v1961
      %1963 = vmatprep.mubr.f32.mxu0 %v1867
      %1964 = vmatmul.mubr.f32.gmra.mrb[0].mxu0 %v1806
      %v1965 = vpop.f32.mrb[0].mxu0
      %v1966 = vadd.f32 0.0, %v1965
      %v1967 = vpop.f32.mrb[0].mxu0
      %v1968 = vadd.f32 0.0, %v1967
      %1969 = vmatprep.mubr.f32.mxu0 %v1870
      %1970 = vmatmul.mubr.f32.gmra.mrb[0].mxu0 %v1808
      %v1971 = vpop.f32.mrb[0].mxu0
      %v1972 = vadd.f32 0.0, %v1971
      %v1973 = vpop.f32.mrb[0].mxu0
      %v1974 = vadd.f32 0.0, %v1973
      %1975 = vmatprep.mubr.f32.mxu0 %v1873
      %1976 = vmatmul.mubr.f32.gmra.mrb[0].mxu0 %v1810
      %v1977 = vpop.f32.mrb[0].mxu0
      %v1978 = vadd.f32 0.0, %v1977
      %v1979 = vpop.f32.mrb[0].mxu0
      %v1980 = vadd.f32 0.0, %v1979
      %1981 = vmatprep.mubr.f32.mxu0 %v1876
      %1982 = vmatmul.mubr.f32.gmra.mrb[0].mxu0 %v1812
      %v1983 = vpop.f32.mrb[0].mxu0
      %v1984 = vadd.f32 0.0, %v1983
      %v1985 = vpop.f32.mrb[0].mxu0
      %v1986 = vadd.f32 0.0, %v1985
      %1987 = vmatprep.mubr.f32.mxu0 %v1879
      %1988 = vmatmul.mubr.f32.gmra.mrb[0].mxu0 %v1814
      %v1989 = vpop.f32.mrb[0].mxu0
      %v1990 = vadd.f32 0.0, %v1989
      %v1991 = vpop.f32.mrb[0].mxu0
      %v1992 = vadd.f32 0.0, %v1991
      %1993 = vdwg.mxu0
      %v1994 = vadd.f32 %v1783, %v1948
      %v1995 = vadd.f32 %v1784, %v1950
      %v1996 = vadd.f32 %v1785, %v1954
      %v1997 = vadd.f32 %v1786, %v1956
      %v1998 = vadd.f32 %v1787, %v1960
      %v1999 = vadd.f32 %v1788, %v1962
      %v2000 = vadd.f32 %v1789, %v1966
      %v2001 = vadd.f32 %v1790, %v1968
      %v2002 = vadd.f32 %v1791, %v1972
      %v2003 = vadd.f32 %v1792, %v1974
      %v2004 = vadd.f32 %v1793, %v1978
      %v2005 = vadd.f32 %v1794, %v1980
      %v2006 = vadd.f32 %v1795, %v1984
      %v2007 = vadd.f32 %v1796, %v1986
      %v2008 = vadd.f32 %v1797, %v1990
      %v2009 = vadd.f32 %v1798, %v1992
      %v2010 = vadd.f32 %v1994, %v1996
      %v2011 = vadd.f32 %v2010, %v1998
      %v2012 = vadd.f32 %v2011, %v2000
      %v2013 = vadd.f32 %v2012, %v2002
      %v2014 = vadd.f32 %v2013, %v2004
      %v2015 = vadd.f32 %v2014, %v2006
      %v2016 = vadd.f32 %v2015, %v2008
      %v2017 = vrot.slane %v2016, 4
      %v2018 = vadd.f32 %v2016, %v2017
      %v2019 = vrot.slane %v2018, 2
      %v2020 = vadd.f32 %v2018, %v2019
      %v2021 = vrot.slane %v2020, 1
      %v2022 = vadd.f32 %v2020, %v2021
      %v2023 = vadd.f32 %v1995, %v1997
      %v2024 = vadd.f32 %v2023, %v1999
      %v2025 = vadd.f32 %v2024, %v2001
      %v2026 = vadd.f32 %v2025, %v2003
      %v2027 = vadd.f32 %v2026, %v2005
      %v2028 = vadd.f32 %v2027, %v2007
      %v2029 = vadd.f32 %v2028, %v2009
      %v2030 = vrot.slane %v2029, 4
      %v2031 = vadd.f32 %v2029, %v2030
      %v2032 = vrot.slane %v2031, 2
      %v2033 = vadd.f32 %v2031, %v2032
      %v2034 = vrot.slane %v2033, 1
      %v2035 = vadd.f32 %v2033, %v2034
      %v2036 = vmul.f32 %v1994, %v1994
      %v2037 = vmul.f32 %v1995, %v1995
      %v2038 = vmul.f32 %v1996, %v1996
      %v2039 = vmul.f32 %v1997, %v1997
      %v2040 = vmul.f32 %v1998, %v1998
      %v2041 = vmul.f32 %v1999, %v1999
      %v2042 = vmul.f32 %v2000, %v2000
      %v2043 = vmul.f32 %v2001, %v2001
      %v2044 = vmul.f32 %v2002, %v2002
      %v2045 = vmul.f32 %v2003, %v2003
      %v2046 = vmul.f32 %v2004, %v2004
      %v2047 = vmul.f32 %v2005, %v2005
      %v2048 = vmul.f32 %v2006, %v2006
      %v2049 = vmul.f32 %v2007, %v2007
      %v2050 = vmul.f32 %v2008, %v2008
      %v2051 = vmul.f32 %v2009, %v2009
      %v2052 = vadd.f32 %v2036, %v2038
      %v2053 = vadd.f32 %v2052, %v2040
      %v2054 = vadd.f32 %v2053, %v2042
      %v2055 = vadd.f32 %v2054, %v2044
      %v2056 = vadd.f32 %v2055, %v2046
      %v2057 = vadd.f32 %v2056, %v2048
      %v2058 = vadd.f32 %v2057, %v2050
      %v2059 = vrot.slane %v2058, 4
      %v2060 = vadd.f32 %v2058, %v2059
      %v2061 = vrot.slane %v2060, 2
      %v2062 = vadd.f32 %v2060, %v2061
      %v2063 = vrot.slane %v2062, 1
      %v2064 = vadd.f32 %v2062, %v2063
      %v2065 = vadd.f32 %v2037, %v2039
      %v2066 = vadd.f32 %v2065, %v2041
      %v2067 = vadd.f32 %v2066, %v2043
      %v2068 = vadd.f32 %v2067, %v2045
      %v2069 = vadd.f32 %v2068, %v2047
      %v2070 = vadd.f32 %v2069, %v2049
      %v2071 = vadd.f32 %v2070, %v2051
      %v2072 = vrot.slane %v2071, 4
      %v2073 = vadd.f32 %v2071, %v2072
      %v2074 = vrot.slane %v2073, 2
      %v2075 = vadd.f32 %v2073, %v2074
      %v2076 = vrot.slane %v2075, 1
      %v2077 = vadd.f32 %v2075, %v2076
      %v2078 = vadd.f32 %v2022, 0.0
      %v2079 = vadd.f32 %v2064, 0.0
      %2081 = vrot.lane.b32.xlu0 %v2022, 96
      %v2082 = vpop.permute.xlu0 %2081
      %v2084 = vadd.f32 %v2078, %v2082
      %2086 = vrot.lane.b32.xlu0 %v2064, 96
      %v2087 = vpop.permute.xlu0 %2086
      %v2089 = vadd.f32 %v2079, %v2087
      %2090 = vrot.lane.b32.xlu0 %v2022, 64
      %v2091 = vpop.permute.xlu0 %2090
      %v2093 = vadd.f32 %v2084, %v2091
      %2094 = vrot.lane.b32.xlu0 %v2064, 64
      %v2095 = vpop.permute.xlu0 %2094
      %v2097 = vadd.f32 %v2089, %v2095
      %2098 = vrot.lane.b32.xlu0 %v2022, 32
      %v2099 = vpop.permute.xlu0 %2098
      %v2101 = vadd.f32 %v2093, %v2099
      %2102 = vrot.lane.b32.xlu0 %v2064, 32
      %v2103 = vpop.permute.xlu0 %2102
      %v2105 = vadd.f32 %v2097, %v2103
      %v2106 = vadd.f32 %v2101, %v2035
      %v2107 = vadd.f32 %v2105, %v2077
      %2109 = vrot.lane.b32.xlu0 %v2035, 96
      %v2110 = vpop.permute.xlu0 %2109
      %v2112 = vadd.f32 %v2106, %v2110
      %2114 = vrot.lane.b32.xlu0 %v2077, 96
      %v2115 = vpop.permute.xlu0 %2114
      %v2117 = vadd.f32 %v2107, %v2115
      %2118 = vrot.lane.b32.xlu0 %v2035, 64
      %v2119 = vpop.permute.xlu0 %2118
      %v2121 = vadd.f32 %v2112, %v2119
      %2122 = vrot.lane.b32.xlu0 %v2077, 64
      %v2123 = vpop.permute.xlu0 %2122
      %v2125 = vadd.f32 %v2117, %v2123
      %2126 = vrot.lane.b32.xlu0 %v2035, 32
      %v2127 = vpop.permute.xlu0 %2126
      %v2129 = vadd.f32 %v2121, %v2127
      %2130 = vrot.lane.b32.xlu0 %v2077, 32
      %v2131 = vpop.permute.xlu0 %2130
      %v2133 = vadd.f32 %v2125, %v2131
      %v2134 = vmul.f32 %v2129, 0.001953125
      %v2135 = vmul.f32 %v2133, 0.001953125
      %v2136 = vmul.f32 %v2134, %v2134
      %v2137 = vsub.f32 %v2135, %v2136
      %v2138 = vadd.f32 %v2137, 1e-05
      %v2139 = vrsqrt.pop %v2138
      %2141 = vrot.lane.b32.xlu0 %v2134, 32
      %v2142 = vpop.permute.xlu0 %2141
      %2144 = vrot.lane.b32.xlu0 %v2134, 64
      %v2145 = vpop.permute.xlu0 %2144
      %2147 = vrot.lane.b32.xlu0 %v2134, 96
      %v2148 = vpop.permute.xlu0 %2147
      %v2150 = vsel %vm258, %v2134, %v2142
      %vm2151 = vcmask 523264
      %v2152 = vsel %vm2151, %v2150, %v2145
      %vm2153 = vcmask 785408
      %v2154 = vsel %vm2153, %v2152, %v2148
      %2156 = vrot.lane.b32.xlu0 %v2139, 32
      %v2157 = vpop.permute.xlu0 %2156
      %2159 = vrot.lane.b32.xlu0 %v2139, 64
      %v2160 = vpop.permute.xlu0 %2159
      %2162 = vrot.lane.b32.xlu0 %v2139, 96
      %v2163 = vpop.permute.xlu0 %2162
      %v2165 = vsel %vm258, %v2139, %v2157
      %v2166 = vsel %vm2151, %v2165, %v2160
      %v2167 = vsel %vm2153, %v2166, %v2163
      %v2168 = vlaneseq
      %v2169 = vshrl.u32 %v2168, 7
      %v2170 = vsub.s32 0, %v2169
      %v2171 = vrot.slane %v2154, %v2170
      %v2172 = vsub.f32 %v1994, %v2171
      %v2173 = vsub.f32 %v1995, %v2171
      %v2174 = vsub.f32 %v1996, %v2171
      %v2175 = vsub.f32 %v1997, %v2171
      %v2176 = vsub.f32 %v1998, %v2171
      %v2177 = vsub.f32 %v1999, %v2171
      %v2178 = vsub.f32 %v2000, %v2171
      %v2179 = vsub.f32 %v2001, %v2171
      %v2180 = vsub.f32 %v2002, %v2171
      %v2181 = vsub.f32 %v2003, %v2171
      %v2182 = vsub.f32 %v2004, %v2171
      %v2183 = vsub.f32 %v2005, %v2171
      %v2184 = vsub.f32 %v2006, %v2171
      %v2185 = vsub.f32 %v2007, %v2171
      %v2186 = vsub.f32 %v2008, %v2171
      %v2187 = vsub.f32 %v2009, %v2171
      %v2188 = vlaneseq
      %v2189 = vshrl.u32 %v2188, 7
      %v2190 = vsub.s32 0, %v2189
      %v2191 = vrot.slane %v2167, %v2190
      %v2192 = vmul.f32 %v2172, %v2191
      %v2193 = vmul.f32 %v2173, %v2191
      %v2194 = vmul.f32 %v2174, %v2191
      %v2195 = vmul.f32 %v2175, %v2191
      %v2196 = vmul.f32 %v2176, %v2191
      %v2197 = vmul.f32 %v2177, %v2191
      %v2198 = vmul.f32 %v2178, %v2191
      %v2199 = vmul.f32 %v2179, %v2191
      %v2200 = vmul.f32 %v2180, %v2191
      %v2201 = vmul.f32 %v2181, %v2191
      %v2202 = vmul.f32 %v2182, %v2191
      %v2203 = vmul.f32 %v2183, %v2191
      %v2204 = vmul.f32 %v2184, %v2191
      %v2205 = vmul.f32 %v2185, %v2191
      %v2206 = vmul.f32 %v2186, %v2191
      %v2207 = vmul.f32 %v2187, %v2191
      %v2208 = vmax.f32 %v2192, 0.0
      %v2209 = vmax.f32 %v2193, 0.0
      %v2210 = vmax.f32 %v2194, 0.0
      %v2211 = vmax.f32 %v2195, 0.0
      %v2212 = vmax.f32 %v2196, 0.0
      %v2213 = vmax.f32 %v2197, 0.0
      %v2214 = vmax.f32 %v2198, 0.0
      %v2215 = vmax.f32 %v2199, 0.0
      %v2216 = vmax.f32 %v2200, 0.0
      %v2217 = vmax.f32 %v2201, 0.0
      %v2218 = vmax.f32 %v2202, 0.0
      %v2219 = vmax.f32 %v2203, 0.0
      %v2220 = vmax.f32 %v2204, 0.0
      %v2221 = vmax.f32 %v2205, 0.0
      %v2222 = vmax.f32 %v2206, 0.0
      %v2223 = vmax.f32 %v2207, 0.0
      %2224 = vst [vmem:[%s143] sm:$0xff] %v2208
      %2225 = vst [vmem:[%s143 + $0x8] sm:$0xff] %v2209
      %2226 = vst [vmem:[%s143 + $0x10] sm:$0xff] %v2210
      %2227 = vst [vmem:[%s143 + $0x18] sm:$0xff] %v2211
      %2228 = vst [vmem:[%s143 + $0x20] sm:$0xff] %v2212
      %2229 = vst [vmem:[%s143 + $0x28] sm:$0xff] %v2213
      %2230 = vst [vmem:[%s143 + $0x30] sm:$0xff] %v2214
      %2231 = vst [vmem:[%s143 + $0x38] sm:$0xff] %v2215
      %2232 = vst [vmem:[%s143 + $0x40] sm:$0xff] %v2216
      %2233 = vst [vmem:[%s143 + $0x48] sm:$0xff] %v2217
      %2234 = vst [vmem:[%s143 + $0x50] sm:$0xff] %v2218
      %2235 = vst [vmem:[%s143 + $0x58] sm:$0xff] %v2219
      %2236 = vst [vmem:[%s143 + $0x60] sm:$0xff] %v2220
      %2237 = vst [vmem:[%s143 + $0x68] sm:$0xff] %v2221
      %2238 = vst [vmem:[%s143 + $0x70] sm:$0xff] %v2222
      %2239 = vst [vmem:[%s143 + $0x78] sm:$0xff] %v2223
      %p2240 = scmp.lt.s32.totalorder %s13, 1
      %s2241 = scalar_select %p2240, %s13, 1
      %s2242 = smul.addr %s2241, 16
      %s2243 = smul.addr %s2242, 8
      %s2244 = scalar_lea.vmem %s2, %s2243
      // Predicated region
      $region29: #{conv3d_block.1} parent=27 // pred_check
        %p2245 = pneg %p78
      $region30: #{conv3d_block.1} parent=27 // pred_check_branch
        %2247 = sbr.rel (%p2245) target = $region32
      $region31: #{conv3d_block.1} parent=27 // pred_region
        _
      $region32: #{conv3d_block.1} parent=27 // pred_fallthru
        _
    $region28: #{conv3d_block.1} parent=5 // pred_fallthru
      _
    %p2248 = scmp.le.s32.totalorder 2, %s8
    // Predicated region
    $region33: #{conv3d_block.1} parent=5 // pred_check
      %p2249 = pneg %p2248
    $region34: #{conv3d_block.1} parent=5 // pred_check_branch
      %2251 = sbr.rel (%p2249) target = $region36
    $region35: #{conv3d_block.1} parent=5 // pred_region
      %s2252 = ssub.s32 %s8, 2
      // Predicated region
      $region37: #{conv3d_block.1} parent=35 // pred_check
        %p2253 = pneg %p84
      $region38: #{conv3d_block.1} parent=35 // pred_check_branch
        %2255 = sbr.rel (%p2253) target = $region40
      $region39: #{conv3d_block.1} parent=35 // pred_region
        %p2256 = scmp.lt.s32.totalorder %s14, 1
        %s2257 = scalar_select %p2256, %s14, 1
        %s2258 = smul.addr %s2257, 16
        %s2259 = smul.addr %s2258, 8
        %s2260 = scalar_lea.vmem %s2, %s2259
      $region40: #{conv3d_block.1} parent=35 // pred_fallthru
        _
    $region36: #{conv3d_block.1} parent=5 // pred_fallthru
      _
  $region6: #{conv3d_block.1} parent=0 // loop_footer
    %s12 = sadd.s32 1, %s8
  $region7: #{conv3d_block.1} parent=0 // loop_footer_branch
    %7 = sbr.rel target = $region3
  $region8: #{conv3d_block.1} parent=0 // loop_exit
    _

</llo_original>
